<compile_context>
chip_gen: v6e
topology: v6e:2x2x1
jax: 0.10.0
libtpu: 0.0.40
codegen_flags: <defaults>
</compile_context>

<pallas_src>
import math

import jax
import jax.numpy as jnp
import numpy as np
from jax.experimental import pallas as pl
from jax.experimental.pallas import tpu as pltpu


def _round_up(x: int, m: int) -> int:
    return -(-x // m) * m


def make_cin_kernel(num_features: int, embed_dim: int, num_layers: int):
    F = num_features
    E = embed_dim
    L = num_layers
    FF = F * F

    def kernel(x_ref, w_ref, b_ref, o_ref):
        # x_ref: [F*E, Bt]  VMEM input tile (row f*E + e, lanes = samples)
        # w_ref: [L*F*FF]   SMEM conv weights, w[(l*F + o)*FF + c], c = f0*F+fin
        # b_ref: [L*F]      SMEM conv biases
        # o_ref: [L*F, Bt]  VMEM sum-pooled per-layer/per-channel outputs
        # Slice x once into F embedding blocks (reused by every layer).
        x_blocks = [x_ref[f * E:(f + 1) * E, :] for f in range(F)]   # F x [E, Bt]
        h_blocks = x_blocks                                          # layer-0 h == x
        pools = []
        for l in range(L):                       # static unroll, L small
            # Interaction tensor: z[c] = x0[f0] * h[fin], c = f0*F + fin.
            z = [x_blocks[f0] * h_blocks[fin]
                 for f0 in range(F) for fin in range(F)]             # FF x [E, Bt]
            new_h = []
            for o in range(F):                   # Conv1d(k=1) on the VPU:
                base = (l * F + o) * FF          # out[o] = relu(b + sum_c w*z[c])
                acc = z[0] * w_ref[base]
                for c in range(1, FF):
                    acc = acc + z[c] * w_ref[base + c]
                acc = jnp.maximum(acc + b_ref[l * F + o], 0.0)       # [E, Bt]
                new_h.append(acc)
                # Sum-pool over the E embedding rows of this channel.
                pools.append(jnp.sum(acc, axis=0, keepdims=True))    # [1, Bt]
            h_blocks = new_h
        # One lane-dense, unmasked store of the whole [L*F, Bt] block.
        o_ref[...] = jnp.concatenate(pools, axis=0).astype(o_ref.dtype)

    return kernel


def cin_pallas(x, conv_ws, conv_bs, fc_w, fc_b, *, block_b=None):
    """x: [B, F, E]; conv_ws[l]: [F, F*F]; conv_bs[l]: [F];
    fc_w: [1, F*L]; fc_b: [1].  Returns [B, 1] (== PyTorch CIN.forward)."""
    B, F, E = x.shape
    L = len(conv_ws)
    FF = F * F

    # ---- batch tiling: samples live on the lane axis -----------------------
    if block_b is None:
        block_b = 512                              # big tiles amortize per-step cost
    block_b = max(128, _round_up(block_b, 128))    # lane-dense tiles
    b_ceil = max(128, _round_up(B, 128))
    block_b = min(block_b, b_ceil)
    # Prefer >=2 grid blocks when the batch allows it (v7x: 2 TensorCores).
    if b_ceil // block_b < 2 and b_ceil >= 256:
        block_b = _round_up(b_ceil // 2, 128)
    B_pad = _round_up(B, block_b)
    num_blocks = B_pad // block_b

    x = x.astype(jnp.float32)
    if B_pad != B:
        x = jnp.pad(x, ((0, B_pad - B), (0, 0), (0, 0)))
    # [B, F, E] -> [F*E, B_pad]  (row f*E + e, batch samples in lanes)
    x_t = jnp.transpose(x, (1, 2, 0)).reshape(F * E, B_pad)

    # Compact Conv1d(k=1) parameters, flattened to 1-D for SMEM residency
    # (1-D avoids the 2-D SMEM padding blow-up).
    w_flat = jnp.concatenate([w.astype(jnp.float32).reshape(-1)
                              for w in conv_ws])                     # [L*F*FF]
    b_flat = jnp.concatenate([b.astype(jnp.float32).reshape(-1)
                              for b in conv_bs])                     # [L*F]

    # Advisory cost of the real (un-expanded) conv work.
    flops = L * B_pad * E * (FF + 2 * F * FF + 3 * F)
    bytes_accessed = (x_t.size + L * F * B_pad + w_flat.size + b_flat.size) * 4

    kernel = make_cin_kernel(F, E, L)
    pooled = pl.pallas_call(
        kernel,
        out_shape=jax.ShapeDtypeStruct((L * F, B_pad), jnp.float32),
        grid=(num_blocks,),
        in_specs=[
            pl.BlockSpec((F * E, block_b), lambda i: (0, i)),
            pl.BlockSpec(memory_space=pltpu.MemorySpace.SMEM),
            pl.BlockSpec(memory_space=pltpu.MemorySpace.SMEM),
        ],
        out_specs=pl.BlockSpec((L * F, block_b), lambda i: (0, i)),
        compiler_params=pltpu.CompilerParams(
            dimension_semantics=("parallel",)),      # batch tiles shard across TCs
        cost_estimate=pl.CostEstimate(
            flops=int(flops), transcendentals=0,
            bytes_accessed=int(bytes_accessed)),
    )(x_t, w_flat, b_flat)

    pooled = pooled[:, :B]                                           # [L*F, B]
    # Tiny final Linear outside the kernel (keeps the kernel output lane-dense).
    y = jnp.dot(fc_w.astype(jnp.float32), pooled,
                precision=jax.lax.Precision.HIGHEST)                 # [1, B]
    return y.T + fc_b.astype(jnp.float32)[None, :]                   # [B, 1]


def cin_reference(x, conv_ws, conv_bs, fc_w, fc_b):
    """Pure-JAX mirror of the PyTorch forward (for verification)."""
    B, F, E = x.shape
    x0 = x[:, :, None, :]                      # [B, F, 1, E]
    h = x
    outs = []
    for w, b in zip(conv_ws, conv_bs):
        z = (x0 * h[:, None, :, :]).reshape(B, F * F, E)             # [B, F*F, E]
        o = jnp.einsum("oc,bce->boe", w.astype(jnp.float32), z,
                       precision=jax.lax.Precision.HIGHEST)
        o = jnp.maximum(o + b.astype(jnp.float32)[None, :, None], 0.0)
        h = o
        outs.append(o)
    cat = jnp.concatenate(outs, axis=1)        # [B, L*F, E]
    s = jnp.sum(cat, axis=2)                   # [B, L*F]
    return jnp.dot(s, fc_w.astype(jnp.float32).T,
                   precision=jax.lax.Precision.HIGHEST) + fc_b[None, :]


if __name__ == "__main__":
    # batch, input_dim (features), embed_dim, num_layers
    B, F, E, L = 256, 4, 16, 2                 # -> 2 grid steps of 128 samples

    key = jax.random.PRNGKey(0)
    keys = jax.random.split(key, 3 + 2 * L)

    x = jax.random.normal(keys[0], (B, F, E), dtype=jnp.float32)

    # Deterministic parameter init (PyTorch-style uniform bounds, synthetic).
    conv_ws, conv_bs = [], []
    for i in range(L):
        bound = 1.0 / math.sqrt(F * F)         # fan_in = in_channels * kernel_size
        conv_ws.append(jax.random.uniform(keys[1 + 2 * i], (F, F * F),
                                          jnp.float32, -bound, bound))
        conv_bs.append(jax.random.uniform(keys[2 + 2 * i], (F,),
                                          jnp.float32, -bound, bound))
    fc_bound = 1.0 / math.sqrt(F * L)
    fc_w = jax.random.uniform(keys[-2], (1, F * L), jnp.float32,
                              -fc_bound, fc_bound)
    fc_b = jax.random.uniform(keys[-1], (1,), jnp.float32, -fc_bound, fc_bound)

    out = cin_pallas(x, conv_ws, conv_bs, fc_w, fc_b)
    out = jax.block_until_ready(out)

    ref = cin_reference(x, conv_ws, conv_bs, fc_w, fc_b)
    assert out.shape == (B, 1), out.shape
    err = float(np.max(np.abs(np.asarray(out) - np.asarray(ref))))
    # All-f32 VPU path: tight tolerance catches any layout/indexing bug.
    assert np.allclose(np.asarray(out), np.asarray(ref), rtol=1e-4, atol=1e-4), err

    print("KERNEL_OK")
</pallas_src>

<mosaic_0001>
module attributes {stable_mosaic.version = 11 : i64} {
  func.func @kernel(%arg0: i32, %arg1: memref<64x128xf32, #tpu.memory_space<vmem>>, %arg2: memref<128xf32, #tpu.memory_space<smem>>, %arg3: memref<8xf32, #tpu.memory_space<smem>>, %arg4: memref<8x128xf32, #tpu.memory_space<vmem>>) attributes {dimension_semantics = [#tpu.dimension_semantics<parallel>], iteration_bounds = array<i64: 2>, scalar_prefetch = 0 : i64, scratch_operands = 0 : i64, tpu.core_type = #tpu.core_type<tc>, window_params = [{transform_indices = @transform_0, window_bounds = array<i64: 64, 128>}, {transform_indices = @transform_1, window_bounds = array<i64: 128>}, {transform_indices = @transform_2, window_bounds = array<i64: 8>}, {transform_indices = @transform_3, window_bounds = array<i64: 8, 128>}]} {
    %c0 = arith.constant 0 : index
    %c0_0 = arith.constant 0 : index
    %0 = vector.load %arg1[%c0, %c0_0] : memref<64x128xf32, #tpu.memory_space<vmem>>, vector<16x128xf32>
    %c16 = arith.constant 16 : index
    %c0_1 = arith.constant 0 : index
    %1 = vector.load %arg1[%c16, %c0_1] : memref<64x128xf32, #tpu.memory_space<vmem>>, vector<16x128xf32>
    %c32 = arith.constant 32 : index
    %c0_2 = arith.constant 0 : index
    %2 = vector.load %arg1[%c32, %c0_2] : memref<64x128xf32, #tpu.memory_space<vmem>>, vector<16x128xf32>
    %c48 = arith.constant 48 : index
    %c0_3 = arith.constant 0 : index
    %3 = vector.load %arg1[%c48, %c0_3] : memref<64x128xf32, #tpu.memory_space<vmem>>, vector<16x128xf32>
    %4 = arith.mulf %0, %0 : vector<16x128xf32>
    %5 = arith.mulf %0, %1 : vector<16x128xf32>
    %6 = arith.mulf %0, %2 : vector<16x128xf32>
    %7 = arith.mulf %0, %3 : vector<16x128xf32>
    %8 = arith.mulf %1, %0 : vector<16x128xf32>
    %9 = arith.mulf %1, %1 : vector<16x128xf32>
    %10 = arith.mulf %1, %2 : vector<16x128xf32>
    %11 = arith.mulf %1, %3 : vector<16x128xf32>
    %12 = arith.mulf %2, %0 : vector<16x128xf32>
    %13 = arith.mulf %2, %1 : vector<16x128xf32>
    %14 = arith.mulf %2, %2 : vector<16x128xf32>
    %15 = arith.mulf %2, %3 : vector<16x128xf32>
    %16 = arith.mulf %3, %0 : vector<16x128xf32>
    %17 = arith.mulf %3, %1 : vector<16x128xf32>
    %18 = arith.mulf %3, %2 : vector<16x128xf32>
    %19 = arith.mulf %3, %3 : vector<16x128xf32>
    %c0_4 = arith.constant 0 : index
    %20 = memref.load %arg2[%c0_4] : memref<128xf32, #tpu.memory_space<smem>>
    %21 = vector.broadcast %20 : f32 to vector<16x128xf32>
    %22 = arith.mulf %4, %21 : vector<16x128xf32>
    %c1 = arith.constant 1 : index
    %23 = memref.load %arg2[%c1] : memref<128xf32, #tpu.memory_space<smem>>
    %24 = vector.broadcast %23 : f32 to vector<16x128xf32>
    %25 = arith.mulf %5, %24 : vector<16x128xf32>
    %26 = arith.addf %22, %25 : vector<16x128xf32>
    %c2 = arith.constant 2 : index
    %27 = memref.load %arg2[%c2] : memref<128xf32, #tpu.memory_space<smem>>
    %28 = vector.broadcast %27 : f32 to vector<16x128xf32>
    %29 = arith.mulf %6, %28 : vector<16x128xf32>
    %30 = arith.addf %26, %29 : vector<16x128xf32>
    %c3 = arith.constant 3 : index
    %31 = memref.load %arg2[%c3] : memref<128xf32, #tpu.memory_space<smem>>
    %32 = vector.broadcast %31 : f32 to vector<16x128xf32>
    %33 = arith.mulf %7, %32 : vector<16x128xf32>
    %34 = arith.addf %30, %33 : vector<16x128xf32>
    %c4 = arith.constant 4 : index
    %35 = memref.load %arg2[%c4] : memref<128xf32, #tpu.memory_space<smem>>
    %36 = vector.broadcast %35 : f32 to vector<16x128xf32>
    %37 = arith.mulf %8, %36 : vector<16x128xf32>
    %38 = arith.addf %34, %37 : vector<16x128xf32>
    %c5 = arith.constant 5 : index
    %39 = memref.load %arg2[%c5] : memref<128xf32, #tpu.memory_space<smem>>
    %40 = vector.broadcast %39 : f32 to vector<16x128xf32>
    %41 = arith.mulf %9, %40 : vector<16x128xf32>
    %42 = arith.addf %38, %41 : vector<16x128xf32>
    %c6 = arith.constant 6 : index
    %43 = memref.load %arg2[%c6] : memref<128xf32, #tpu.memory_space<smem>>
    %44 = vector.broadcast %43 : f32 to vector<16x128xf32>
    %45 = arith.mulf %10, %44 : vector<16x128xf32>
    %46 = arith.addf %42, %45 : vector<16x128xf32>
    %c7 = arith.constant 7 : index
    %47 = memref.load %arg2[%c7] : memref<128xf32, #tpu.memory_space<smem>>
    %48 = vector.broadcast %47 : f32 to vector<16x128xf32>
    %49 = arith.mulf %11, %48 : vector<16x128xf32>
    %50 = arith.addf %46, %49 : vector<16x128xf32>
    %c8 = arith.constant 8 : index
    %51 = memref.load %arg2[%c8] : memref<128xf32, #tpu.memory_space<smem>>
    %52 = vector.broadcast %51 : f32 to vector<16x128xf32>
    %53 = arith.mulf %12, %52 : vector<16x128xf32>
    %54 = arith.addf %50, %53 : vector<16x128xf32>
    %c9 = arith.constant 9 : index
    %55 = memref.load %arg2[%c9] : memref<128xf32, #tpu.memory_space<smem>>
    %56 = vector.broadcast %55 : f32 to vector<16x128xf32>
    %57 = arith.mulf %13, %56 : vector<16x128xf32>
    %58 = arith.addf %54, %57 : vector<16x128xf32>
    %c10 = arith.constant 10 : index
    %59 = memref.load %arg2[%c10] : memref<128xf32, #tpu.memory_space<smem>>
    %60 = vector.broadcast %59 : f32 to vector<16x128xf32>
    %61 = arith.mulf %14, %60 : vector<16x128xf32>
    %62 = arith.addf %58, %61 : vector<16x128xf32>
    %c11 = arith.constant 11 : index
    %63 = memref.load %arg2[%c11] : memref<128xf32, #tpu.memory_space<smem>>
    %64 = vector.broadcast %63 : f32 to vector<16x128xf32>
    %65 = arith.mulf %15, %64 : vector<16x128xf32>
    %66 = arith.addf %62, %65 : vector<16x128xf32>
    %c12 = arith.constant 12 : index
    %67 = memref.load %arg2[%c12] : memref<128xf32, #tpu.memory_space<smem>>
    %68 = vector.broadcast %67 : f32 to vector<16x128xf32>
    %69 = arith.mulf %16, %68 : vector<16x128xf32>
    %70 = arith.addf %66, %69 : vector<16x128xf32>
    %c13 = arith.constant 13 : index
    %71 = memref.load %arg2[%c13] : memref<128xf32, #tpu.memory_space<smem>>
    %72 = vector.broadcast %71 : f32 to vector<16x128xf32>
    %73 = arith.mulf %17, %72 : vector<16x128xf32>
    %74 = arith.addf %70, %73 : vector<16x128xf32>
    %c14 = arith.constant 14 : index
    %75 = memref.load %arg2[%c14] : memref<128xf32, #tpu.memory_space<smem>>
    %76 = vector.broadcast %75 : f32 to vector<16x128xf32>
    %77 = arith.mulf %18, %76 : vector<16x128xf32>
    %78 = arith.addf %74, %77 : vector<16x128xf32>
    %c15 = arith.constant 15 : index
    %79 = memref.load %arg2[%c15] : memref<128xf32, #tpu.memory_space<smem>>
    %80 = vector.broadcast %79 : f32 to vector<16x128xf32>
    %81 = arith.mulf %19, %80 : vector<16x128xf32>
    %82 = arith.addf %78, %81 : vector<16x128xf32>
    %c0_5 = arith.constant 0 : index
    %83 = memref.load %arg3[%c0_5] : memref<8xf32, #tpu.memory_space<smem>>
    %84 = vector.broadcast %83 : f32 to vector<16x128xf32>
    %85 = arith.addf %82, %84 : vector<16x128xf32>
    %cst = arith.constant 0.000000e+00 : f32
    %86 = vector.broadcast %cst : f32 to vector<16x128xf32>
    %87 = arith.maximumf %85, %86 : vector<16x128xf32>
    %cst_6 = arith.constant dense<0.000000e+00> : vector<128xf32>
    %88 = vector.multi_reduction <add>, %87, %cst_6 [0] : vector<16x128xf32> to vector<128xf32>
    %89 = vector.shape_cast %88 : vector<128xf32> to vector<1x128xf32>
    %c16_7 = arith.constant 16 : index
    %90 = memref.load %arg2[%c16_7] : memref<128xf32, #tpu.memory_space<smem>>
    %91 = vector.broadcast %90 : f32 to vector<16x128xf32>
    %92 = arith.mulf %4, %91 : vector<16x128xf32>
    %c17 = arith.constant 17 : index
    %93 = memref.load %arg2[%c17] : memref<128xf32, #tpu.memory_space<smem>>
    %94 = vector.broadcast %93 : f32 to vector<16x128xf32>
    %95 = arith.mulf %5, %94 : vector<16x128xf32>
    %96 = arith.addf %92, %95 : vector<16x128xf32>
    %c18 = arith.constant 18 : index
    %97 = memref.load %arg2[%c18] : memref<128xf32, #tpu.memory_space<smem>>
    %98 = vector.broadcast %97 : f32 to vector<16x128xf32>
    %99 = arith.mulf %6, %98 : vector<16x128xf32>
    %100 = arith.addf %96, %99 : vector<16x128xf32>
    %c19 = arith.constant 19 : index
    %101 = memref.load %arg2[%c19] : memref<128xf32, #tpu.memory_space<smem>>
    %102 = vector.broadcast %101 : f32 to vector<16x128xf32>
    %103 = arith.mulf %7, %102 : vector<16x128xf32>
    %104 = arith.addf %100, %103 : vector<16x128xf32>
    %c20 = arith.constant 20 : index
    %105 = memref.load %arg2[%c20] : memref<128xf32, #tpu.memory_space<smem>>
    %106 = vector.broadcast %105 : f32 to vector<16x128xf32>
    %107 = arith.mulf %8, %106 : vector<16x128xf32>
    %108 = arith.addf %104, %107 : vector<16x128xf32>
    %c21 = arith.constant 21 : index
    %109 = memref.load %arg2[%c21] : memref<128xf32, #tpu.memory_space<smem>>
    %110 = vector.broadcast %109 : f32 to vector<16x128xf32>
    %111 = arith.mulf %9, %110 : vector<16x128xf32>
    %112 = arith.addf %108, %111 : vector<16x128xf32>
    %c22 = arith.constant 22 : index
    %113 = memref.load %arg2[%c22] : memref<128xf32, #tpu.memory_space<smem>>
    %114 = vector.broadcast %113 : f32 to vector<16x128xf32>
    %115 = arith.mulf %10, %114 : vector<16x128xf32>
    %116 = arith.addf %112, %115 : vector<16x128xf32>
    %c23 = arith.constant 23 : index
    %117 = memref.load %arg2[%c23] : memref<128xf32, #tpu.memory_space<smem>>
    %118 = vector.broadcast %117 : f32 to vector<16x128xf32>
    %119 = arith.mulf %11, %118 : vector<16x128xf32>
    %120 = arith.addf %116, %119 : vector<16x128xf32>
    %c24 = arith.constant 24 : index
    %121 = memref.load %arg2[%c24] : memref<128xf32, #tpu.memory_space<smem>>
    %122 = vector.broadcast %121 : f32 to vector<16x128xf32>
    %123 = arith.mulf %12, %122 : vector<16x128xf32>
    %124 = arith.addf %120, %123 : vector<16x128xf32>
    %c25 = arith.constant 25 : index
    %125 = memref.load %arg2[%c25] : memref<128xf32, #tpu.memory_space<smem>>
    %126 = vector.broadcast %125 : f32 to vector<16x128xf32>
    %127 = arith.mulf %13, %126 : vector<16x128xf32>
    %128 = arith.addf %124, %127 : vector<16x128xf32>
    %c26 = arith.constant 26 : index
    %129 = memref.load %arg2[%c26] : memref<128xf32, #tpu.memory_space<smem>>
    %130 = vector.broadcast %129 : f32 to vector<16x128xf32>
    %131 = arith.mulf %14, %130 : vector<16x128xf32>
    %132 = arith.addf %128, %131 : vector<16x128xf32>
    %c27 = arith.constant 27 : index
    %133 = memref.load %arg2[%c27] : memref<128xf32, #tpu.memory_space<smem>>
    %134 = vector.broadcast %133 : f32 to vector<16x128xf32>
    %135 = arith.mulf %15, %134 : vector<16x128xf32>
    %136 = arith.addf %132, %135 : vector<16x128xf32>
    %c28 = arith.constant 28 : index
    %137 = memref.load %arg2[%c28] : memref<128xf32, #tpu.memory_space<smem>>
    %138 = vector.broadcast %137 : f32 to vector<16x128xf32>
    %139 = arith.mulf %16, %138 : vector<16x128xf32>
    %140 = arith.addf %136, %139 : vector<16x128xf32>
    %c29 = arith.constant 29 : index
    %141 = memref.load %arg2[%c29] : memref<128xf32, #tpu.memory_space<smem>>
    %142 = vector.broadcast %141 : f32 to vector<16x128xf32>
    %143 = arith.mulf %17, %142 : vector<16x128xf32>
    %144 = arith.addf %140, %143 : vector<16x128xf32>
    %c30 = arith.constant 30 : index
    %145 = memref.load %arg2[%c30] : memref<128xf32, #tpu.memory_space<smem>>
    %146 = vector.broadcast %145 : f32 to vector<16x128xf32>
    %147 = arith.mulf %18, %146 : vector<16x128xf32>
    %148 = arith.addf %144, %147 : vector<16x128xf32>
    %c31 = arith.constant 31 : index
    %149 = memref.load %arg2[%c31] : memref<128xf32, #tpu.memory_space<smem>>
    %150 = vector.broadcast %149 : f32 to vector<16x128xf32>
    %151 = arith.mulf %19, %150 : vector<16x128xf32>
    %152 = arith.addf %148, %151 : vector<16x128xf32>
    %c1_8 = arith.constant 1 : index
    %153 = memref.load %arg3[%c1_8] : memref<8xf32, #tpu.memory_space<smem>>
    %154 = vector.broadcast %153 : f32 to vector<16x128xf32>
    %155 = arith.addf %152, %154 : vector<16x128xf32>
    %cst_9 = arith.constant 0.000000e+00 : f32
    %156 = vector.broadcast %cst_9 : f32 to vector<16x128xf32>
    %157 = arith.maximumf %155, %156 : vector<16x128xf32>
    %cst_10 = arith.constant dense<0.000000e+00> : vector<128xf32>
    %158 = vector.multi_reduction <add>, %157, %cst_10 [0] : vector<16x128xf32> to vector<128xf32>
    %159 = vector.shape_cast %158 : vector<128xf32> to vector<1x128xf32>
    %c32_11 = arith.constant 32 : index
    %160 = memref.load %arg2[%c32_11] : memref<128xf32, #tpu.memory_space<smem>>
    %161 = vector.broadcast %160 : f32 to vector<16x128xf32>
    %162 = arith.mulf %4, %161 : vector<16x128xf32>
    %c33 = arith.constant 33 : index
    %163 = memref.load %arg2[%c33] : memref<128xf32, #tpu.memory_space<smem>>
    %164 = vector.broadcast %163 : f32 to vector<16x128xf32>
    %165 = arith.mulf %5, %164 : vector<16x128xf32>
    %166 = arith.addf %162, %165 : vector<16x128xf32>
    %c34 = arith.constant 34 : index
    %167 = memref.load %arg2[%c34] : memref<128xf32, #tpu.memory_space<smem>>
    %168 = vector.broadcast %167 : f32 to vector<16x128xf32>
    %169 = arith.mulf %6, %168 : vector<16x128xf32>
    %170 = arith.addf %166, %169 : vector<16x128xf32>
    %c35 = arith.constant 35 : index
    %171 = memref.load %arg2[%c35] : memref<128xf32, #tpu.memory_space<smem>>
    %172 = vector.broadcast %171 : f32 to vector<16x128xf32>
    %173 = arith.mulf %7, %172 : vector<16x128xf32>
    %174 = arith.addf %170, %173 : vector<16x128xf32>
    %c36 = arith.constant 36 : index
    %175 = memref.load %arg2[%c36] : memref<128xf32, #tpu.memory_space<smem>>
    %176 = vector.broadcast %175 : f32 to vector<16x128xf32>
    %177 = arith.mulf %8, %176 : vector<16x128xf32>
    %178 = arith.addf %174, %177 : vector<16x128xf32>
    %c37 = arith.constant 37 : index
    %179 = memref.load %arg2[%c37] : memref<128xf32, #tpu.memory_space<smem>>
    %180 = vector.broadcast %179 : f32 to vector<16x128xf32>
    %181 = arith.mulf %9, %180 : vector<16x128xf32>
    %182 = arith.addf %178, %181 : vector<16x128xf32>
    %c38 = arith.constant 38 : index
    %183 = memref.load %arg2[%c38] : memref<128xf32, #tpu.memory_space<smem>>
    %184 = vector.broadcast %183 : f32 to vector<16x128xf32>
    %185 = arith.mulf %10, %184 : vector<16x128xf32>
    %186 = arith.addf %182, %185 : vector<16x128xf32>
    %c39 = arith.constant 39 : index
    %187 = memref.load %arg2[%c39] : memref<128xf32, #tpu.memory_space<smem>>
    %188 = vector.broadcast %187 : f32 to vector<16x128xf32>
    %189 = arith.mulf %11, %188 : vector<16x128xf32>
    %190 = arith.addf %186, %189 : vector<16x128xf32>
    %c40 = arith.constant 40 : index
    %191 = memref.load %arg2[%c40] : memref<128xf32, #tpu.memory_space<smem>>
    %192 = vector.broadcast %191 : f32 to vector<16x128xf32>
    %193 = arith.mulf %12, %192 : vector<16x128xf32>
    %194 = arith.addf %190, %193 : vector<16x128xf32>
    %c41 = arith.constant 41 : index
    %195 = memref.load %arg2[%c41] : memref<128xf32, #tpu.memory_space<smem>>
    %196 = vector.broadcast %195 : f32 to vector<16x128xf32>
    %197 = arith.mulf %13, %196 : vector<16x128xf32>
    %198 = arith.addf %194, %197 : vector<16x128xf32>
    %c42 = arith.constant 42 : index
    %199 = memref.load %arg2[%c42] : memref<128xf32, #tpu.memory_space<smem>>
    %200 = vector.broadcast %199 : f32 to vector<16x128xf32>
    %201 = arith.mulf %14, %200 : vector<16x128xf32>
    %202 = arith.addf %198, %201 : vector<16x128xf32>
    %c43 = arith.constant 43 : index
    %203 = memref.load %arg2[%c43] : memref<128xf32, #tpu.memory_space<smem>>
    %204 = vector.broadcast %203 : f32 to vector<16x128xf32>
    %205 = arith.mulf %15, %204 : vector<16x128xf32>
    %206 = arith.addf %202, %205 : vector<16x128xf32>
    %c44 = arith.constant 44 : index
    %207 = memref.load %arg2[%c44] : memref<128xf32, #tpu.memory_space<smem>>
    %208 = vector.broadcast %207 : f32 to vector<16x128xf32>
    %209 = arith.mulf %16, %208 : vector<16x128xf32>
    %210 = arith.addf %206, %209 : vector<16x128xf32>
    %c45 = arith.constant 45 : index
    %211 = memref.load %arg2[%c45] : memref<128xf32, #tpu.memory_space<smem>>
    %212 = vector.broadcast %211 : f32 to vector<16x128xf32>
    %213 = arith.mulf %17, %212 : vector<16x128xf32>
    %214 = arith.addf %210, %213 : vector<16x128xf32>
    %c46 = arith.constant 46 : index
    %215 = memref.load %arg2[%c46] : memref<128xf32, #tpu.memory_space<smem>>
    %216 = vector.broadcast %215 : f32 to vector<16x128xf32>
    %217 = arith.mulf %18, %216 : vector<16x128xf32>
    %218 = arith.addf %214, %217 : vector<16x128xf32>
    %c47 = arith.constant 47 : index
    %219 = memref.load %arg2[%c47] : memref<128xf32, #tpu.memory_space<smem>>
    %220 = vector.broadcast %219 : f32 to vector<16x128xf32>
    %221 = arith.mulf %19, %220 : vector<16x128xf32>
    %222 = arith.addf %218, %221 : vector<16x128xf32>
    %c2_12 = arith.constant 2 : index
    %223 = memref.load %arg3[%c2_12] : memref<8xf32, #tpu.memory_space<smem>>
    %224 = vector.broadcast %223 : f32 to vector<16x128xf32>
    %225 = arith.addf %222, %224 : vector<16x128xf32>
    %cst_13 = arith.constant 0.000000e+00 : f32
    %226 = vector.broadcast %cst_13 : f32 to vector<16x128xf32>
    %227 = arith.maximumf %225, %226 : vector<16x128xf32>
    %cst_14 = arith.constant dense<0.000000e+00> : vector<128xf32>
    %228 = vector.multi_reduction <add>, %227, %cst_14 [0] : vector<16x128xf32> to vector<128xf32>
    %229 = vector.shape_cast %228 : vector<128xf32> to vector<1x128xf32>
    %c48_15 = arith.constant 48 : index
    %230 = memref.load %arg2[%c48_15] : memref<128xf32, #tpu.memory_space<smem>>
    %231 = vector.broadcast %230 : f32 to vector<16x128xf32>
    %232 = arith.mulf %4, %231 : vector<16x128xf32>
    %c49 = arith.constant 49 : index
    %233 = memref.load %arg2[%c49] : memref<128xf32, #tpu.memory_space<smem>>
    %234 = vector.broadcast %233 : f32 to vector<16x128xf32>
    %235 = arith.mulf %5, %234 : vector<16x128xf32>
    %236 = arith.addf %232, %235 : vector<16x128xf32>
    %c50 = arith.constant 50 : index
    %237 = memref.load %arg2[%c50] : memref<128xf32, #tpu.memory_space<smem>>
    %238 = vector.broadcast %237 : f32 to vector<16x128xf32>
    %239 = arith.mulf %6, %238 : vector<16x128xf32>
    %240 = arith.addf %236, %239 : vector<16x128xf32>
    %c51 = arith.constant 51 : index
    %241 = memref.load %arg2[%c51] : memref<128xf32, #tpu.memory_space<smem>>
    %242 = vector.broadcast %241 : f32 to vector<16x128xf32>
    %243 = arith.mulf %7, %242 : vector<16x128xf32>
    %244 = arith.addf %240, %243 : vector<16x128xf32>
    %c52 = arith.constant 52 : index
    %245 = memref.load %arg2[%c52] : memref<128xf32, #tpu.memory_space<smem>>
    %246 = vector.broadcast %245 : f32 to vector<16x128xf32>
    %247 = arith.mulf %8, %246 : vector<16x128xf32>
    %248 = arith.addf %244, %247 : vector<16x128xf32>
    %c53 = arith.constant 53 : index
    %249 = memref.load %arg2[%c53] : memref<128xf32, #tpu.memory_space<smem>>
    %250 = vector.broadcast %249 : f32 to vector<16x128xf32>
    %251 = arith.mulf %9, %250 : vector<16x128xf32>
    %252 = arith.addf %248, %251 : vector<16x128xf32>
    %c54 = arith.constant 54 : index
    %253 = memref.load %arg2[%c54] : memref<128xf32, #tpu.memory_space<smem>>
    %254 = vector.broadcast %253 : f32 to vector<16x128xf32>
    %255 = arith.mulf %10, %254 : vector<16x128xf32>
    %256 = arith.addf %252, %255 : vector<16x128xf32>
    %c55 = arith.constant 55 : index
    %257 = memref.load %arg2[%c55] : memref<128xf32, #tpu.memory_space<smem>>
    %258 = vector.broadcast %257 : f32 to vector<16x128xf32>
    %259 = arith.mulf %11, %258 : vector<16x128xf32>
    %260 = arith.addf %256, %259 : vector<16x128xf32>
    %c56 = arith.constant 56 : index
    %261 = memref.load %arg2[%c56] : memref<128xf32, #tpu.memory_space<smem>>
    %262 = vector.broadcast %261 : f32 to vector<16x128xf32>
    %263 = arith.mulf %12, %262 : vector<16x128xf32>
    %264 = arith.addf %260, %263 : vector<16x128xf32>
    %c57 = arith.constant 57 : index
    %265 = memref.load %arg2[%c57] : memref<128xf32, #tpu.memory_space<smem>>
    %266 = vector.broadcast %265 : f32 to vector<16x128xf32>
    %267 = arith.mulf %13, %266 : vector<16x128xf32>
    %268 = arith.addf %264, %267 : vector<16x128xf32>
    %c58 = arith.constant 58 : index
    %269 = memref.load %arg2[%c58] : memref<128xf32, #tpu.memory_space<smem>>
    %270 = vector.broadcast %269 : f32 to vector<16x128xf32>
    %271 = arith.mulf %14, %270 : vector<16x128xf32>
    %272 = arith.addf %268, %271 : vector<16x128xf32>
    %c59 = arith.constant 59 : index
    %273 = memref.load %arg2[%c59] : memref<128xf32, #tpu.memory_space<smem>>
    %274 = vector.broadcast %273 : f32 to vector<16x128xf32>
    %275 = arith.mulf %15, %274 : vector<16x128xf32>
    %276 = arith.addf %272, %275 : vector<16x128xf32>
    %c60 = arith.constant 60 : index
    %277 = memref.load %arg2[%c60] : memref<128xf32, #tpu.memory_space<smem>>
    %278 = vector.broadcast %277 : f32 to vector<16x128xf32>
    %279 = arith.mulf %16, %278 : vector<16x128xf32>
    %280 = arith.addf %276, %279 : vector<16x128xf32>
    %c61 = arith.constant 61 : index
    %281 = memref.load %arg2[%c61] : memref<128xf32, #tpu.memory_space<smem>>
    %282 = vector.broadcast %281 : f32 to vector<16x128xf32>
    %283 = arith.mulf %17, %282 : vector<16x128xf32>
    %284 = arith.addf %280, %283 : vector<16x128xf32>
    %c62 = arith.constant 62 : index
    %285 = memref.load %arg2[%c62] : memref<128xf32, #tpu.memory_space<smem>>
    %286 = vector.broadcast %285 : f32 to vector<16x128xf32>
    %287 = arith.mulf %18, %286 : vector<16x128xf32>
    %288 = arith.addf %284, %287 : vector<16x128xf32>
    %c63 = arith.constant 63 : index
    %289 = memref.load %arg2[%c63] : memref<128xf32, #tpu.memory_space<smem>>
    %290 = vector.broadcast %289 : f32 to vector<16x128xf32>
    %291 = arith.mulf %19, %290 : vector<16x128xf32>
    %292 = arith.addf %288, %291 : vector<16x128xf32>
    %c3_16 = arith.constant 3 : index
    %293 = memref.load %arg3[%c3_16] : memref<8xf32, #tpu.memory_space<smem>>
    %294 = vector.broadcast %293 : f32 to vector<16x128xf32>
    %295 = arith.addf %292, %294 : vector<16x128xf32>
    %cst_17 = arith.constant 0.000000e+00 : f32
    %296 = vector.broadcast %cst_17 : f32 to vector<16x128xf32>
    %297 = arith.maximumf %295, %296 : vector<16x128xf32>
    %cst_18 = arith.constant dense<0.000000e+00> : vector<128xf32>
    %298 = vector.multi_reduction <add>, %297, %cst_18 [0] : vector<16x128xf32> to vector<128xf32>
    %299 = vector.shape_cast %298 : vector<128xf32> to vector<1x128xf32>
    %300 = arith.mulf %0, %87 : vector<16x128xf32>
    %301 = arith.mulf %0, %157 : vector<16x128xf32>
    %302 = arith.mulf %0, %227 : vector<16x128xf32>
    %303 = arith.mulf %0, %297 : vector<16x128xf32>
    %304 = arith.mulf %1, %87 : vector<16x128xf32>
    %305 = arith.mulf %1, %157 : vector<16x128xf32>
    %306 = arith.mulf %1, %227 : vector<16x128xf32>
    %307 = arith.mulf %1, %297 : vector<16x128xf32>
    %308 = arith.mulf %2, %87 : vector<16x128xf32>
    %309 = arith.mulf %2, %157 : vector<16x128xf32>
    %310 = arith.mulf %2, %227 : vector<16x128xf32>
    %311 = arith.mulf %2, %297 : vector<16x128xf32>
    %312 = arith.mulf %3, %87 : vector<16x128xf32>
    %313 = arith.mulf %3, %157 : vector<16x128xf32>
    %314 = arith.mulf %3, %227 : vector<16x128xf32>
    %315 = arith.mulf %3, %297 : vector<16x128xf32>
    %c64 = arith.constant 64 : index
    %316 = memref.load %arg2[%c64] : memref<128xf32, #tpu.memory_space<smem>>
    %317 = vector.broadcast %316 : f32 to vector<16x128xf32>
    %318 = arith.mulf %300, %317 : vector<16x128xf32>
    %c65 = arith.constant 65 : index
    %319 = memref.load %arg2[%c65] : memref<128xf32, #tpu.memory_space<smem>>
    %320 = vector.broadcast %319 : f32 to vector<16x128xf32>
    %321 = arith.mulf %301, %320 : vector<16x128xf32>
    %322 = arith.addf %318, %321 : vector<16x128xf32>
    %c66 = arith.constant 66 : index
    %323 = memref.load %arg2[%c66] : memref<128xf32, #tpu.memory_space<smem>>
    %324 = vector.broadcast %323 : f32 to vector<16x128xf32>
    %325 = arith.mulf %302, %324 : vector<16x128xf32>
    %326 = arith.addf %322, %325 : vector<16x128xf32>
    %c67 = arith.constant 67 : index
    %327 = memref.load %arg2[%c67] : memref<128xf32, #tpu.memory_space<smem>>
    %328 = vector.broadcast %327 : f32 to vector<16x128xf32>
    %329 = arith.mulf %303, %328 : vector<16x128xf32>
    %330 = arith.addf %326, %329 : vector<16x128xf32>
    %c68 = arith.constant 68 : index
    %331 = memref.load %arg2[%c68] : memref<128xf32, #tpu.memory_space<smem>>
    %332 = vector.broadcast %331 : f32 to vector<16x128xf32>
    %333 = arith.mulf %304, %332 : vector<16x128xf32>
    %334 = arith.addf %330, %333 : vector<16x128xf32>
    %c69 = arith.constant 69 : index
    %335 = memref.load %arg2[%c69] : memref<128xf32, #tpu.memory_space<smem>>
    %336 = vector.broadcast %335 : f32 to vector<16x128xf32>
    %337 = arith.mulf %305, %336 : vector<16x128xf32>
    %338 = arith.addf %334, %337 : vector<16x128xf32>
    %c70 = arith.constant 70 : index
    %339 = memref.load %arg2[%c70] : memref<128xf32, #tpu.memory_space<smem>>
    %340 = vector.broadcast %339 : f32 to vector<16x128xf32>
    %341 = arith.mulf %306, %340 : vector<16x128xf32>
    %342 = arith.addf %338, %341 : vector<16x128xf32>
    %c71 = arith.constant 71 : index
    %343 = memref.load %arg2[%c71] : memref<128xf32, #tpu.memory_space<smem>>
    %344 = vector.broadcast %343 : f32 to vector<16x128xf32>
    %345 = arith.mulf %307, %344 : vector<16x128xf32>
    %346 = arith.addf %342, %345 : vector<16x128xf32>
    %c72 = arith.constant 72 : index
    %347 = memref.load %arg2[%c72] : memref<128xf32, #tpu.memory_space<smem>>
    %348 = vector.broadcast %347 : f32 to vector<16x128xf32>
    %349 = arith.mulf %308, %348 : vector<16x128xf32>
    %350 = arith.addf %346, %349 : vector<16x128xf32>
    %c73 = arith.constant 73 : index
    %351 = memref.load %arg2[%c73] : memref<128xf32, #tpu.memory_space<smem>>
    %352 = vector.broadcast %351 : f32 to vector<16x128xf32>
    %353 = arith.mulf %309, %352 : vector<16x128xf32>
    %354 = arith.addf %350, %353 : vector<16x128xf32>
    %c74 = arith.constant 74 : index
    %355 = memref.load %arg2[%c74] : memref<128xf32, #tpu.memory_space<smem>>
    %356 = vector.broadcast %355 : f32 to vector<16x128xf32>
    %357 = arith.mulf %310, %356 : vector<16x128xf32>
    %358 = arith.addf %354, %357 : vector<16x128xf32>
    %c75 = arith.constant 75 : index
    %359 = memref.load %arg2[%c75] : memref<128xf32, #tpu.memory_space<smem>>
    %360 = vector.broadcast %359 : f32 to vector<16x128xf32>
    %361 = arith.mulf %311, %360 : vector<16x128xf32>
    %362 = arith.addf %358, %361 : vector<16x128xf32>
    %c76 = arith.constant 76 : index
    %363 = memref.load %arg2[%c76] : memref<128xf32, #tpu.memory_space<smem>>
    %364 = vector.broadcast %363 : f32 to vector<16x128xf32>
    %365 = arith.mulf %312, %364 : vector<16x128xf32>
    %366 = arith.addf %362, %365 : vector<16x128xf32>
    %c77 = arith.constant 77 : index
    %367 = memref.load %arg2[%c77] : memref<128xf32, #tpu.memory_space<smem>>
    %368 = vector.broadcast %367 : f32 to vector<16x128xf32>
    %369 = arith.mulf %313, %368 : vector<16x128xf32>
    %370 = arith.addf %366, %369 : vector<16x128xf32>
    %c78 = arith.constant 78 : index
    %371 = memref.load %arg2[%c78] : memref<128xf32, #tpu.memory_space<smem>>
    %372 = vector.broadcast %371 : f32 to vector<16x128xf32>
    %373 = arith.mulf %314, %372 : vector<16x128xf32>
    %374 = arith.addf %370, %373 : vector<16x128xf32>
    %c79 = arith.constant 79 : index
    %375 = memref.load %arg2[%c79] : memref<128xf32, #tpu.memory_space<smem>>
    %376 = vector.broadcast %375 : f32 to vector<16x128xf32>
    %377 = arith.mulf %315, %376 : vector<16x128xf32>
    %378 = arith.addf %374, %377 : vector<16x128xf32>
    %c4_19 = arith.constant 4 : index
    %379 = memref.load %arg3[%c4_19] : memref<8xf32, #tpu.memory_space<smem>>
    %380 = vector.broadcast %379 : f32 to vector<16x128xf32>
    %381 = arith.addf %378, %380 : vector<16x128xf32>
    %cst_20 = arith.constant 0.000000e+00 : f32
    %382 = vector.broadcast %cst_20 : f32 to vector<16x128xf32>
    %383 = arith.maximumf %381, %382 : vector<16x128xf32>
    %cst_21 = arith.constant dense<0.000000e+00> : vector<128xf32>
    %384 = vector.multi_reduction <add>, %383, %cst_21 [0] : vector<16x128xf32> to vector<128xf32>
    %385 = vector.shape_cast %384 : vector<128xf32> to vector<1x128xf32>
    %c80 = arith.constant 80 : index
    %386 = memref.load %arg2[%c80] : memref<128xf32, #tpu.memory_space<smem>>
    %387 = vector.broadcast %386 : f32 to vector<16x128xf32>
    %388 = arith.mulf %300, %387 : vector<16x128xf32>
    %c81 = arith.constant 81 : index
    %389 = memref.load %arg2[%c81] : memref<128xf32, #tpu.memory_space<smem>>
    %390 = vector.broadcast %389 : f32 to vector<16x128xf32>
    %391 = arith.mulf %301, %390 : vector<16x128xf32>
    %392 = arith.addf %388, %391 : vector<16x128xf32>
    %c82 = arith.constant 82 : index
    %393 = memref.load %arg2[%c82] : memref<128xf32, #tpu.memory_space<smem>>
    %394 = vector.broadcast %393 : f32 to vector<16x128xf32>
    %395 = arith.mulf %302, %394 : vector<16x128xf32>
    %396 = arith.addf %392, %395 : vector<16x128xf32>
    %c83 = arith.constant 83 : index
    %397 = memref.load %arg2[%c83] : memref<128xf32, #tpu.memory_space<smem>>
    %398 = vector.broadcast %397 : f32 to vector<16x128xf32>
    %399 = arith.mulf %303, %398 : vector<16x128xf32>
    %400 = arith.addf %396, %399 : vector<16x128xf32>
    %c84 = arith.constant 84 : index
    %401 = memref.load %arg2[%c84] : memref<128xf32, #tpu.memory_space<smem>>
    %402 = vector.broadcast %401 : f32 to vector<16x128xf32>
    %403 = arith.mulf %304, %402 : vector<16x128xf32>
    %404 = arith.addf %400, %403 : vector<16x128xf32>
    %c85 = arith.constant 85 : index
    %405 = memref.load %arg2[%c85] : memref<128xf32, #tpu.memory_space<smem>>
    %406 = vector.broadcast %405 : f32 to vector<16x128xf32>
    %407 = arith.mulf %305, %406 : vector<16x128xf32>
    %408 = arith.addf %404, %407 : vector<16x128xf32>
    %c86 = arith.constant 86 : index
    %409 = memref.load %arg2[%c86] : memref<128xf32, #tpu.memory_space<smem>>
    %410 = vector.broadcast %409 : f32 to vector<16x128xf32>
    %411 = arith.mulf %306, %410 : vector<16x128xf32>
    %412 = arith.addf %408, %411 : vector<16x128xf32>
    %c87 = arith.constant 87 : index
    %413 = memref.load %arg2[%c87] : memref<128xf32, #tpu.memory_space<smem>>
    %414 = vector.broadcast %413 : f32 to vector<16x128xf32>
    %415 = arith.mulf %307, %414 : vector<16x128xf32>
    %416 = arith.addf %412, %415 : vector<16x128xf32>
    %c88 = arith.constant 88 : index
    %417 = memref.load %arg2[%c88] : memref<128xf32, #tpu.memory_space<smem>>
    %418 = vector.broadcast %417 : f32 to vector<16x128xf32>
    %419 = arith.mulf %308, %418 : vector<16x128xf32>
    %420 = arith.addf %416, %419 : vector<16x128xf32>
    %c89 = arith.constant 89 : index
    %421 = memref.load %arg2[%c89] : memref<128xf32, #tpu.memory_space<smem>>
    %422 = vector.broadcast %421 : f32 to vector<16x128xf32>
    %423 = arith.mulf %309, %422 : vector<16x128xf32>
    %424 = arith.addf %420, %423 : vector<16x128xf32>
    %c90 = arith.constant 90 : index
    %425 = memref.load %arg2[%c90] : memref<128xf32, #tpu.memory_space<smem>>
    %426 = vector.broadcast %425 : f32 to vector<16x128xf32>
    %427 = arith.mulf %310, %426 : vector<16x128xf32>
    %428 = arith.addf %424, %427 : vector<16x128xf32>
    %c91 = arith.constant 91 : index
    %429 = memref.load %arg2[%c91] : memref<128xf32, #tpu.memory_space<smem>>
    %430 = vector.broadcast %429 : f32 to vector<16x128xf32>
    %431 = arith.mulf %311, %430 : vector<16x128xf32>
    %432 = arith.addf %428, %431 : vector<16x128xf32>
    %c92 = arith.constant 92 : index
    %433 = memref.load %arg2[%c92] : memref<128xf32, #tpu.memory_space<smem>>
    %434 = vector.broadcast %433 : f32 to vector<16x128xf32>
    %435 = arith.mulf %312, %434 : vector<16x128xf32>
    %436 = arith.addf %432, %435 : vector<16x128xf32>
    %c93 = arith.constant 93 : index
    %437 = memref.load %arg2[%c93] : memref<128xf32, #tpu.memory_space<smem>>
    %438 = vector.broadcast %437 : f32 to vector<16x128xf32>
    %439 = arith.mulf %313, %438 : vector<16x128xf32>
    %440 = arith.addf %436, %439 : vector<16x128xf32>
    %c94 = arith.constant 94 : index
    %441 = memref.load %arg2[%c94] : memref<128xf32, #tpu.memory_space<smem>>
    %442 = vector.broadcast %441 : f32 to vector<16x128xf32>
    %443 = arith.mulf %314, %442 : vector<16x128xf32>
    %444 = arith.addf %440, %443 : vector<16x128xf32>
    %c95 = arith.constant 95 : index
    %445 = memref.load %arg2[%c95] : memref<128xf32, #tpu.memory_space<smem>>
    %446 = vector.broadcast %445 : f32 to vector<16x128xf32>
    %447 = arith.mulf %315, %446 : vector<16x128xf32>
    %448 = arith.addf %444, %447 : vector<16x128xf32>
    %c5_22 = arith.constant 5 : index
    %449 = memref.load %arg3[%c5_22] : memref<8xf32, #tpu.memory_space<smem>>
    %450 = vector.broadcast %449 : f32 to vector<16x128xf32>
    %451 = arith.addf %448, %450 : vector<16x128xf32>
    %cst_23 = arith.constant 0.000000e+00 : f32
    %452 = vector.broadcast %cst_23 : f32 to vector<16x128xf32>
    %453 = arith.maximumf %451, %452 : vector<16x128xf32>
    %cst_24 = arith.constant dense<0.000000e+00> : vector<128xf32>
    %454 = vector.multi_reduction <add>, %453, %cst_24 [0] : vector<16x128xf32> to vector<128xf32>
    %455 = vector.shape_cast %454 : vector<128xf32> to vector<1x128xf32>
    %c96 = arith.constant 96 : index
    %456 = memref.load %arg2[%c96] : memref<128xf32, #tpu.memory_space<smem>>
    %457 = vector.broadcast %456 : f32 to vector<16x128xf32>
    %458 = arith.mulf %300, %457 : vector<16x128xf32>
    %c97 = arith.constant 97 : index
    %459 = memref.load %arg2[%c97] : memref<128xf32, #tpu.memory_space<smem>>
    %460 = vector.broadcast %459 : f32 to vector<16x128xf32>
    %461 = arith.mulf %301, %460 : vector<16x128xf32>
    %462 = arith.addf %458, %461 : vector<16x128xf32>
    %c98 = arith.constant 98 : index
    %463 = memref.load %arg2[%c98] : memref<128xf32, #tpu.memory_space<smem>>
    %464 = vector.broadcast %463 : f32 to vector<16x128xf32>
    %465 = arith.mulf %302, %464 : vector<16x128xf32>
    %466 = arith.addf %462, %465 : vector<16x128xf32>
    %c99 = arith.constant 99 : index
    %467 = memref.load %arg2[%c99] : memref<128xf32, #tpu.memory_space<smem>>
    %468 = vector.broadcast %467 : f32 to vector<16x128xf32>
    %469 = arith.mulf %303, %468 : vector<16x128xf32>
    %470 = arith.addf %466, %469 : vector<16x128xf32>
    %c100 = arith.constant 100 : index
    %471 = memref.load %arg2[%c100] : memref<128xf32, #tpu.memory_space<smem>>
    %472 = vector.broadcast %471 : f32 to vector<16x128xf32>
    %473 = arith.mulf %304, %472 : vector<16x128xf32>
    %474 = arith.addf %470, %473 : vector<16x128xf32>
    %c101 = arith.constant 101 : index
    %475 = memref.load %arg2[%c101] : memref<128xf32, #tpu.memory_space<smem>>
    %476 = vector.broadcast %475 : f32 to vector<16x128xf32>
    %477 = arith.mulf %305, %476 : vector<16x128xf32>
    %478 = arith.addf %474, %477 : vector<16x128xf32>
    %c102 = arith.constant 102 : index
    %479 = memref.load %arg2[%c102] : memref<128xf32, #tpu.memory_space<smem>>
    %480 = vector.broadcast %479 : f32 to vector<16x128xf32>
    %481 = arith.mulf %306, %480 : vector<16x128xf32>
    %482 = arith.addf %478, %481 : vector<16x128xf32>
    %c103 = arith.constant 103 : index
    %483 = memref.load %arg2[%c103] : memref<128xf32, #tpu.memory_space<smem>>
    %484 = vector.broadcast %483 : f32 to vector<16x128xf32>
    %485 = arith.mulf %307, %484 : vector<16x128xf32>
    %486 = arith.addf %482, %485 : vector<16x128xf32>
    %c104 = arith.constant 104 : index
    %487 = memref.load %arg2[%c104] : memref<128xf32, #tpu.memory_space<smem>>
    %488 = vector.broadcast %487 : f32 to vector<16x128xf32>
    %489 = arith.mulf %308, %488 : vector<16x128xf32>
    %490 = arith.addf %486, %489 : vector<16x128xf32>
    %c105 = arith.constant 105 : index
    %491 = memref.load %arg2[%c105] : memref<128xf32, #tpu.memory_space<smem>>
    %492 = vector.broadcast %491 : f32 to vector<16x128xf32>
    %493 = arith.mulf %309, %492 : vector<16x128xf32>
    %494 = arith.addf %490, %493 : vector<16x128xf32>
    %c106 = arith.constant 106 : index
    %495 = memref.load %arg2[%c106] : memref<128xf32, #tpu.memory_space<smem>>
    %496 = vector.broadcast %495 : f32 to vector<16x128xf32>
    %497 = arith.mulf %310, %496 : vector<16x128xf32>
    %498 = arith.addf %494, %497 : vector<16x128xf32>
    %c107 = arith.constant 107 : index
    %499 = memref.load %arg2[%c107] : memref<128xf32, #tpu.memory_space<smem>>
    %500 = vector.broadcast %499 : f32 to vector<16x128xf32>
    %501 = arith.mulf %311, %500 : vector<16x128xf32>
    %502 = arith.addf %498, %501 : vector<16x128xf32>
    %c108 = arith.constant 108 : index
    %503 = memref.load %arg2[%c108] : memref<128xf32, #tpu.memory_space<smem>>
    %504 = vector.broadcast %503 : f32 to vector<16x128xf32>
    %505 = arith.mulf %312, %504 : vector<16x128xf32>
    %506 = arith.addf %502, %505 : vector<16x128xf32>
    %c109 = arith.constant 109 : index
    %507 = memref.load %arg2[%c109] : memref<128xf32, #tpu.memory_space<smem>>
    %508 = vector.broadcast %507 : f32 to vector<16x128xf32>
    %509 = arith.mulf %313, %508 : vector<16x128xf32>
    %510 = arith.addf %506, %509 : vector<16x128xf32>
    %c110 = arith.constant 110 : index
    %511 = memref.load %arg2[%c110] : memref<128xf32, #tpu.memory_space<smem>>
    %512 = vector.broadcast %511 : f32 to vector<16x128xf32>
    %513 = arith.mulf %314, %512 : vector<16x128xf32>
    %514 = arith.addf %510, %513 : vector<16x128xf32>
    %c111 = arith.constant 111 : index
    %515 = memref.load %arg2[%c111] : memref<128xf32, #tpu.memory_space<smem>>
    %516 = vector.broadcast %515 : f32 to vector<16x128xf32>
    %517 = arith.mulf %315, %516 : vector<16x128xf32>
    %518 = arith.addf %514, %517 : vector<16x128xf32>
    %c6_25 = arith.constant 6 : index
    %519 = memref.load %arg3[%c6_25] : memref<8xf32, #tpu.memory_space<smem>>
    %520 = vector.broadcast %519 : f32 to vector<16x128xf32>
    %521 = arith.addf %518, %520 : vector<16x128xf32>
    %cst_26 = arith.constant 0.000000e+00 : f32
    %522 = vector.broadcast %cst_26 : f32 to vector<16x128xf32>
    %523 = arith.maximumf %521, %522 : vector<16x128xf32>
    %cst_27 = arith.constant dense<0.000000e+00> : vector<128xf32>
    %524 = vector.multi_reduction <add>, %523, %cst_27 [0] : vector<16x128xf32> to vector<128xf32>
    %525 = vector.shape_cast %524 : vector<128xf32> to vector<1x128xf32>
    %c112 = arith.constant 112 : index
    %526 = memref.load %arg2[%c112] : memref<128xf32, #tpu.memory_space<smem>>
    %527 = vector.broadcast %526 : f32 to vector<16x128xf32>
    %528 = arith.mulf %300, %527 : vector<16x128xf32>
    %c113 = arith.constant 113 : index
    %529 = memref.load %arg2[%c113] : memref<128xf32, #tpu.memory_space<smem>>
    %530 = vector.broadcast %529 : f32 to vector<16x128xf32>
    %531 = arith.mulf %301, %530 : vector<16x128xf32>
    %532 = arith.addf %528, %531 : vector<16x128xf32>
    %c114 = arith.constant 114 : index
    %533 = memref.load %arg2[%c114] : memref<128xf32, #tpu.memory_space<smem>>
    %534 = vector.broadcast %533 : f32 to vector<16x128xf32>
    %535 = arith.mulf %302, %534 : vector<16x128xf32>
    %536 = arith.addf %532, %535 : vector<16x128xf32>
    %c115 = arith.constant 115 : index
    %537 = memref.load %arg2[%c115] : memref<128xf32, #tpu.memory_space<smem>>
    %538 = vector.broadcast %537 : f32 to vector<16x128xf32>
    %539 = arith.mulf %303, %538 : vector<16x128xf32>
    %540 = arith.addf %536, %539 : vector<16x128xf32>
    %c116 = arith.constant 116 : index
    %541 = memref.load %arg2[%c116] : memref<128xf32, #tpu.memory_space<smem>>
    %542 = vector.broadcast %541 : f32 to vector<16x128xf32>
    %543 = arith.mulf %304, %542 : vector<16x128xf32>
    %544 = arith.addf %540, %543 : vector<16x128xf32>
    %c117 = arith.constant 117 : index
    %545 = memref.load %arg2[%c117] : memref<128xf32, #tpu.memory_space<smem>>
    %546 = vector.broadcast %545 : f32 to vector<16x128xf32>
    %547 = arith.mulf %305, %546 : vector<16x128xf32>
    %548 = arith.addf %544, %547 : vector<16x128xf32>
    %c118 = arith.constant 118 : index
    %549 = memref.load %arg2[%c118] : memref<128xf32, #tpu.memory_space<smem>>
    %550 = vector.broadcast %549 : f32 to vector<16x128xf32>
    %551 = arith.mulf %306, %550 : vector<16x128xf32>
    %552 = arith.addf %548, %551 : vector<16x128xf32>
    %c119 = arith.constant 119 : index
    %553 = memref.load %arg2[%c119] : memref<128xf32, #tpu.memory_space<smem>>
    %554 = vector.broadcast %553 : f32 to vector<16x128xf32>
    %555 = arith.mulf %307, %554 : vector<16x128xf32>
    %556 = arith.addf %552, %555 : vector<16x128xf32>
    %c120 = arith.constant 120 : index
    %557 = memref.load %arg2[%c120] : memref<128xf32, #tpu.memory_space<smem>>
    %558 = vector.broadcast %557 : f32 to vector<16x128xf32>
    %559 = arith.mulf %308, %558 : vector<16x128xf32>
    %560 = arith.addf %556, %559 : vector<16x128xf32>
    %c121 = arith.constant 121 : index
    %561 = memref.load %arg2[%c121] : memref<128xf32, #tpu.memory_space<smem>>
    %562 = vector.broadcast %561 : f32 to vector<16x128xf32>
    %563 = arith.mulf %309, %562 : vector<16x128xf32>
    %564 = arith.addf %560, %563 : vector<16x128xf32>
    %c122 = arith.constant 122 : index
    %565 = memref.load %arg2[%c122] : memref<128xf32, #tpu.memory_space<smem>>
    %566 = vector.broadcast %565 : f32 to vector<16x128xf32>
    %567 = arith.mulf %310, %566 : vector<16x128xf32>
    %568 = arith.addf %564, %567 : vector<16x128xf32>
    %c123 = arith.constant 123 : index
    %569 = memref.load %arg2[%c123] : memref<128xf32, #tpu.memory_space<smem>>
    %570 = vector.broadcast %569 : f32 to vector<16x128xf32>
    %571 = arith.mulf %311, %570 : vector<16x128xf32>
    %572 = arith.addf %568, %571 : vector<16x128xf32>
    %c124 = arith.constant 124 : index
    %573 = memref.load %arg2[%c124] : memref<128xf32, #tpu.memory_space<smem>>
    %574 = vector.broadcast %573 : f32 to vector<16x128xf32>
    %575 = arith.mulf %312, %574 : vector<16x128xf32>
    %576 = arith.addf %572, %575 : vector<16x128xf32>
    %c125 = arith.constant 125 : index
    %577 = memref.load %arg2[%c125] : memref<128xf32, #tpu.memory_space<smem>>
    %578 = vector.broadcast %577 : f32 to vector<16x128xf32>
    %579 = arith.mulf %313, %578 : vector<16x128xf32>
    %580 = arith.addf %576, %579 : vector<16x128xf32>
    %c126 = arith.constant 126 : index
    %581 = memref.load %arg2[%c126] : memref<128xf32, #tpu.memory_space<smem>>
    %582 = vector.broadcast %581 : f32 to vector<16x128xf32>
    %583 = arith.mulf %314, %582 : vector<16x128xf32>
    %584 = arith.addf %580, %583 : vector<16x128xf32>
    %c127 = arith.constant 127 : index
    %585 = memref.load %arg2[%c127] : memref<128xf32, #tpu.memory_space<smem>>
    %586 = vector.broadcast %585 : f32 to vector<16x128xf32>
    %587 = arith.mulf %315, %586 : vector<16x128xf32>
    %588 = arith.addf %584, %587 : vector<16x128xf32>
    %c7_28 = arith.constant 7 : index
    %589 = memref.load %arg3[%c7_28] : memref<8xf32, #tpu.memory_space<smem>>
    %590 = vector.broadcast %589 : f32 to vector<16x128xf32>
    %591 = arith.addf %588, %590 : vector<16x128xf32>
    %cst_29 = arith.constant 0.000000e+00 : f32
    %592 = vector.broadcast %cst_29 : f32 to vector<16x128xf32>
    %593 = arith.maximumf %591, %592 : vector<16x128xf32>
    %cst_30 = arith.constant dense<0.000000e+00> : vector<128xf32>
    %594 = vector.multi_reduction <add>, %593, %cst_30 [0] : vector<16x128xf32> to vector<128xf32>
    %595 = vector.shape_cast %594 : vector<128xf32> to vector<1x128xf32>
    %596 = tpu.concatenate %89, %159, %229, %299, %385, %455, %525, %595 in 0 : vector<1x128xf32>, vector<1x128xf32>, vector<1x128xf32>, vector<1x128xf32>, vector<1x128xf32>, vector<1x128xf32>, vector<1x128xf32>, vector<1x128xf32> -> vector<8x128xf32>
    %c0_31 = arith.constant 0 : index
    %c0_32 = arith.constant 0 : index
    %597 = vector.load %arg4[%c0_31, %c0_32] : memref<8x128xf32, #tpu.memory_space<vmem>>, vector<8x128xf32>
    tpu.vector_store %arg4[%c0_31, %c0_32], %596 {strides = array<i32>} : memref<8x128xf32, #tpu.memory_space<vmem>>, vector<8x128xf32>,
    return
  }
  func.func @transform_0(%arg0: i32) -> (i32, i32) {
    %c0_i32 = arith.constant 0 : i32
    %c0_i32_0 = arith.constant 0 : i32
    return %c0_i32, %arg0 : i32, i32
  }
  func.func @transform_1(%arg0: i32) -> i32 {
    %c0_i32 = arith.constant 0 : i32
    %c0_i32_0 = arith.constant 0 : i32
    return %c0_i32 : i32
  }
  func.func @transform_2(%arg0: i32) -> i32 {
    %c0_i32 = arith.constant 0 : i32
    %c0_i32_0 = arith.constant 0 : i32
    return %c0_i32 : i32
  }
  func.func @transform_3(%arg0: i32) -> (i32, i32) {
    %c0_i32 = arith.constant 0 : i32
    %c0_i32_0 = arith.constant 0 : i32
    return %c0_i32, %arg0 : i32, i32
  }
}

</mosaic_0001>

<llo_original>
// kernel: tpu_custom_call.1
$region0: #{tpu_custom_call.1}
  #allocation0 [shape = 'u32[]', space=smem, size = 0x4, offset = 0x4, fixed_abs, tag = 'smem constant byte address 0x4 - core index']
  #allocation1 [shape = 'u32[144,128]{1,0:T(1,128)}', space=vmem, size = 0x12000, scoped, tag = 'internal scratch']
  %s0 = inlined_call_operand.hbm [shape: f32[64,256], index: 0, kind: input, shape index: {}]
  %s1 = inlined_call_operand.vmem [shape: f32[128], index: 1, kind: input, shape index: {}]
  %s2 = inlined_call_operand.vmem [shape: f32[8], index: 2, kind: input, shape index: {}]
  %s3 = inlined_call_operand.hbm [shape: f32[8,256], index: 3, kind: output, shape index: {}]
  %s4 = sld [smem:[#allocation0]]
  $region57: #{tpu_custom_call.1} parent=0
    _
  %s6 = ssub.s32 1, %s4
  %s7 = scalar_select 0, %s6, %s4
  $region1: #{tpu_custom_call.1} parent=0
    #allocation2 [shape = 'u8[65536]{0}', space=vmem, size = 0x10000, scoped, tag = 'input window, operand 0']
    #allocation3 [shape = 's32[2]{0}', space=sflag, size = 0x8, scoped, tag = 'scoped memory for tpu_custom_call.1']
    #allocation4 [shape = 's32[2]{0}', space=sflag, size = 0x8, scoped, tag = 'scoped memory for tpu_custom_call.1']
    #allocation5 [shape = 's32[2]{0}', space=sflag, size = 0x8, scoped, tag = 'scoped memory for tpu_custom_call.1']
    #allocation6 [shape = 'u8[512]{0}', space=smem, size = 0x200, scoped, tag = 'input window, operand 1, single buffered']
    #allocation7 [shape = 'u8[512]{0}', space=smem, size = 0x200, scoped, tag = 'input window, operand 2, single buffered']
    #allocation8 [shape = 's32[1]{0}', space=sflag, size = 0x4, scoped, tag = 'scoped memory for tpu_custom_call.1']
    #allocation9 [shape = 'u8[8192]{0}', space=vmem, size = 0x2000, scoped, tag = 'output window, operand 0']
    %8 = vsyncpa [#allocation3], 0
    %s9 = scalar_lea.sflag [#allocation3], 1
    %10 = vsyncpa %s9, 0
    %11 = vsyncpa [#allocation5], 0
    %12 = vsyncpa [#allocation8], 0
    %13 = vsyncpa [#allocation4], 0
    %s14 = scalar_lea.sflag [#allocation4], 1
    %15 = vsyncpa %s14, 0
    loop: start=0, step=1, limit=4
    $region2: #{tpu_custom_call.1} parent=1 // loop_pre_header
      _
    $region3: #{tpu_custom_call.1} parent=1 // loop_header
      %s17 = sphi 0, %s21
      %p18 = scmp.ge.s32.totalorder %s17, 4
      %s27 = sphi 0, %s29
      %s30 = sphi 0, %s27
      %s31 = sphi 0, %s30
      %s47 = sphi 0, %s31
      %s51 = sphi 0, %s51
      %s53 = sphi 0, %s51
      %s54 = sphi 0, %s53
      %s68 = sphi 0, %s54
      %s72 = sphi 0, %s72
      %s74 = sphi 0, %s72
      %s75 = sphi 0, %s74
      %s89 = sphi 0, %s75
      %s95 = sphi 0, %s97
      %s98 = sphi 0, %s95
      %s99 = sphi 0, %s98
      %s115 = sphi 0, %s99
    $region4: #{tpu_custom_call.1} parent=1 // loop_header_branch
      %20 = sbr.rel (%p18) target = $region8
    $region5: #{tpu_custom_call.1} parent=1 // loop_body
      %s22 = ssub.s32 %s17, 1
      %s23 = ssub.s32 %s17, 2
      %s24 = sadd.s32 %s17, 1
      %s25 = ssub.s32 %s17, %s24
      %p26 = scmp.eq.s32.totalorder %s25, 0
      %s28 = sadd.s32 %s27, 1
      %s29 = scalar_select %p26, %s27, %s28
      %p32 = pneg %p26
      %p33 = scmp.eq.s32.totalorder %s17, 1
      %p34 = por %p32, %p33
      %p35 = scmp.ne.s32.totalorder %s27, %s30
      %p36 = scmp.eq.s32.totalorder %s17, 0
      %p37 = por %p35, %p36
      %p38 = scmp.ne.s32.totalorder %s27, %s30
      %p39 = scmp.eq.s32.totalorder %s22, 1
      %p40 = por %p38, %p39
      %p41 = scmp.ne.s32.totalorder %s30, %s31
      %p42 = scmp.eq.s32.totalorder %s22, 0
      %p43 = por %p41, %p42
      %p44 = scmp.ne.s32.totalorder %s30, %s31
      %p45 = scmp.eq.s32.totalorder %s23, 1
      %p46 = por %p44, %p45
      %p48 = scmp.ne.s32.totalorder %s31, %s47
      %p49 = scmp.eq.s32.totalorder %s23, 0
      %p50 = por %p48, %p49
      %s52 = sadd.s32 %s51, 1
      %p55 = scmp.eq.s32.totalorder %s17, 1
      %p56 = scmp.ne.s32.totalorder %s51, %s53
      %p57 = scmp.eq.s32.totalorder %s17, 0
      %p58 = por %p56, %p57
      %p59 = scmp.ne.s32.totalorder %s51, %s53
      %p60 = scmp.eq.s32.totalorder %s22, 1
      %p61 = por %p59, %p60
      %p62 = scmp.ne.s32.totalorder %s53, %s54
      %p63 = scmp.eq.s32.totalorder %s22, 0
      %p64 = por %p62, %p63
      %p65 = scmp.ne.s32.totalorder %s53, %s54
      %p66 = scmp.eq.s32.totalorder %s23, 1
      %p67 = por %p65, %p66
      %p69 = scmp.ne.s32.totalorder %s54, %s68
      %p70 = scmp.eq.s32.totalorder %s23, 0
      %p71 = por %p69, %p70
      %s73 = sadd.s32 %s72, 1
      %p76 = scmp.eq.s32.totalorder %s17, 1
      %p77 = scmp.ne.s32.totalorder %s72, %s74
      %p78 = scmp.eq.s32.totalorder %s17, 0
      %p79 = por %p77, %p78
      %p80 = scmp.ne.s32.totalorder %s72, %s74
      %p81 = scmp.eq.s32.totalorder %s22, 1
      %p82 = por %p80, %p81
      %p83 = scmp.ne.s32.totalorder %s74, %s75
      %p84 = scmp.eq.s32.totalorder %s22, 0
      %p85 = por %p83, %p84
      %p86 = scmp.ne.s32.totalorder %s74, %s75
      %p87 = scmp.eq.s32.totalorder %s23, 1
      %p88 = por %p86, %p87
      %p90 = scmp.ne.s32.totalorder %s75, %s89
      %p91 = scmp.eq.s32.totalorder %s23, 0
      %p92 = por %p90, %p91
      %s93 = ssub.s32 %s17, %s24
      %p94 = scmp.eq.s32.totalorder %s93, 0
      %s96 = sadd.s32 %s95, 1
      %s97 = scalar_select %p94, %s95, %s96
      %p100 = pneg %p94
      %p101 = scmp.eq.s32.totalorder %s17, 1
      %p102 = por %p100, %p101
      %p103 = scmp.ne.s32.totalorder %s95, %s98
      %p104 = scmp.eq.s32.totalorder %s17, 0
      %p105 = por %p103, %p104
      %p106 = scmp.ne.s32.totalorder %s95, %s98
      %p107 = scmp.eq.s32.totalorder %s22, 1
      %p108 = por %p106, %p107
      %p109 = scmp.ne.s32.totalorder %s98, %s99
      %p110 = scmp.eq.s32.totalorder %s22, 0
      %p111 = por %p109, %p110
      %p112 = scmp.ne.s32.totalorder %s98, %s99
      %p113 = scmp.eq.s32.totalorder %s23, 1
      %p114 = por %p112, %p113
      %p116 = scmp.ne.s32.totalorder %s99, %s115
      %p117 = scmp.eq.s32.totalorder %s23, 0
      %p118 = por %p116, %p117
      %p119 = scmp.le.s32.totalorder 1, %s17
      %p120 = scmp.lt.s32.totalorder %s17, 3
      %p121 = pnand %p119, %p120
      %p122 = pneg %p121
      // Predicated region
      $region9: #{tpu_custom_call.1} parent=5 // pred_check
        _
      $region10: #{tpu_custom_call.1} parent=5 // pred_check_branch
        %124 = sbr.rel (%p121) target = $region12
      $region11: #{tpu_custom_call.1} parent=5 // pred_region
        %s125 = ssub.s32 %s17, 1
        // Predicated region
        $region13: #{tpu_custom_call.1} parent=11 // pred_check
          %p126 = pneg %p64
        $region14: #{tpu_custom_call.1} parent=11 // pred_check_branch
          %128 = sbr.rel (%p126) target = $region16
        $region15: #{tpu_custom_call.1} parent=11 // pred_region
          %s130 = ssub.s32 16, 16
          %131 = vsyncadd [#allocation5], %s130
          %s133 = sshll.u32 %s1, 4
          %s134 = int_to_ptr.vmem [resolvable:$true] %s133
          %136 = dma.vmem_to_smem %s134, 16, [#allocation6], [#allocation5]
        $region16: #{tpu_custom_call.1} parent=11 // pred_fallthru
          _
        // Predicated region
        $region17: #{tpu_custom_call.1} parent=11 // pred_check
          %p137 = pneg %p85
        $region18: #{tpu_custom_call.1} parent=11 // pred_check_branch
          %139 = sbr.rel (%p137) target = $region20
        $region19: #{tpu_custom_call.1} parent=11 // pred_region
          %s141 = ssub.s32 16, 16
          %142 = vsyncadd [#allocation8], %s141
          %s144 = sshll.u32 %s2, 4
          %s145 = int_to_ptr.vmem [resolvable:$true] %s144
          %147 = dma.vmem_to_smem %s145, 16, [#allocation7], [#allocation8]
        $region20: #{tpu_custom_call.1} parent=11 // pred_fallthru
          _
      $region12: #{tpu_custom_call.1} parent=5 // pred_fallthru
        _
      %p148 = scmp.lt.s32.totalorder %s17, 2
      // Predicated region
      $region21: #{tpu_custom_call.1} parent=5 // pred_check
        %p149 = pneg %p148
      $region22: #{tpu_custom_call.1} parent=5 // pred_check_branch
        %151 = sbr.rel (%p149) target = $region24
      $region23: #{tpu_custom_call.1} parent=5 // pred_region
        // Predicated region
        $region25: #{tpu_custom_call.1} parent=23 // pred_check
          %p152 = pneg %p37
        $region26: #{tpu_custom_call.1} parent=23 // pred_check_branch
          %154 = sbr.rel (%p152) target = $region28
        $region27: #{tpu_custom_call.1} parent=23 // pred_region
          %s155 = sand.u32 %s27, 1
          %s156 = scalar_lea.sflag [#allocation3], %s155
          %s157 = sand.u32 %s27, 1
          %s158 = smul.addr %s157, 64
          %s159 = scalar_lea.vmem [#allocation2], %s158
          %s161 = ssub.s32 1024, 1024
          %162 = vsyncadd %s156, %s161
          %s163 = smul.addr %s17, 128
          %s164 = scalar_lea.hbm %s0, %s163
          %s165 = sshll.u32 %s159, 4
          %s166 = int_to_ptr.vmem [resolvable:$true] %s165
          %171 = dma.hbm_to_vmem [thread:$0]  %s164, 1024, %s166, %s156, 256, 128, 8
        $region28: #{tpu_custom_call.1} parent=23 // pred_fallthru
          _
      $region24: #{tpu_custom_call.1} parent=5 // pred_fallthru
        _
      %p172 = scmp.le.s32.totalorder 1, %s17
      %p173 = scmp.lt.s32.totalorder %s17, 3
      %p174 = pnand %p172, %p173
      %p175 = pneg %p174
      // Predicated region
      $region29: #{tpu_custom_call.1} parent=5 // pred_check
        _
      $region30: #{tpu_custom_call.1} parent=5 // pred_check_branch
        %177 = sbr.rel (%p174) target = $region32
      $region31: #{tpu_custom_call.1} parent=5 // pred_region
        %s178 = ssub.s32 %s17, 1
        %s179 = sand.u32 %s30, 1
        %s180 = scalar_lea.sflag [#allocation3], %s179
        %s181 = sand.u32 %s30, 1
        %s182 = smul.addr %s181, 64
        %s183 = scalar_lea.vmem [#allocation2], %s182
        // Predicated region
        $region33: #{tpu_custom_call.1} parent=31 // pred_check
          %p184 = pneg %p43
        $region34: #{tpu_custom_call.1} parent=31 // pred_check_branch
          %186 = sbr.rel (%p184) target = $region36
        $region35: #{tpu_custom_call.1} parent=31 // pred_region
          %187 = dma.done %s180, 1024
        $region36: #{tpu_custom_call.1} parent=31 // pred_fallthru
          _
        // Predicated region
        $region37: #{tpu_custom_call.1} parent=31 // pred_check
          %p188 = pneg %p64
        $region38: #{tpu_custom_call.1} parent=31 // pred_check_branch
          %190 = sbr.rel (%p188) target = $region40
        $region39: #{tpu_custom_call.1} parent=31 // pred_region
          %191 = dma.done [#allocation5], 16
        $region40: #{tpu_custom_call.1} parent=31 // pred_fallthru
          _
        // Predicated region
        $region41: #{tpu_custom_call.1} parent=31 // pred_check
          %p192 = pneg %p85
        $region42: #{tpu_custom_call.1} parent=31 // pred_check_branch
          %194 = sbr.rel (%p192) target = $region44
        $region43: #{tpu_custom_call.1} parent=31 // pred_region
          %195 = dma.done [#allocation8], 16
        $region44: #{tpu_custom_call.1} parent=31 // pred_fallthru
          _
        %196 = sfence
        %s197 = sand.u32 %s30, 1
        %s198 = scalar_lea.sflag [#allocation3], %s197
        %s199 = sand.u32 %s30, 1
        %s200 = smul.addr %s199, 64
        %s201 = scalar_lea.vmem [#allocation2], %s200
        %p202 = pneg %p43
        %p203 = pneg %p40
        %p204 = pneg %p64
        %p205 = pneg %p61
        %p206 = pneg %p85
        %p207 = pneg %p82
        %p208 = pneg %p111
        %p209 = pneg %p108
        %s210 = sand.u32 %s98, 1
        %s211 = scalar_lea.sflag [#allocation4], %s210
        %s212 = sand.u32 %s98, 1
        %s213 = smul.addr %s212, 8
        %s214 = scalar_lea.vmem [#allocation9], %s213
        %v215 = vld [vmem:[%s183] sm:$0xff]
        %v216 = vld [vmem:[%s183 + $0x8] sm:$0xff]
        %v217 = vld [vmem:[%s183 + $0x10] sm:$0xff]
        %v218 = vld [vmem:[%s183 + $0x18] sm:$0xff]
        %v219 = vld [vmem:[%s183 + $0x20] sm:$0xff]
        %v220 = vld [vmem:[%s183 + $0x28] sm:$0xff]
        %v221 = vld [vmem:[%s183 + $0x30] sm:$0xff]
        %v222 = vld [vmem:[%s183 + $0x38] sm:$0xff]
        %v223 = vmul.f32 %v215, %v215
        %v224 = vmul.f32 %v216, %v216
        %v225 = vmul.f32 %v215, %v217
        %v226 = vmul.f32 %v216, %v218
        %v227 = vmul.f32 %v215, %v219
        %v228 = vmul.f32 %v216, %v220
        %v229 = vmul.f32 %v215, %v221
        %v230 = vmul.f32 %v216, %v222
        %v231 = vmul.f32 %v217, %v217
        %v232 = vmul.f32 %v218, %v218
        %v233 = vmul.f32 %v217, %v219
        %v234 = vmul.f32 %v218, %v220
        %v235 = vmul.f32 %v217, %v221
        %v236 = vmul.f32 %v218, %v222
        %v237 = vmul.f32 %v219, %v219
        %v238 = vmul.f32 %v220, %v220
        %v239 = vmul.f32 %v219, %v221
        %v240 = vmul.f32 %v220, %v222
        %v241 = vmul.f32 %v221, %v221
        %v242 = vmul.f32 %v222, %v222
        %s243 = sld [smem:[#allocation6]]
        %v244 = vstv %s243
        %v245 = vmul.f32 %v223, %v244
        %v246 = vmul.f32 %v224, %v244
        %s247 = sld [smem:[#allocation6 + $0x1]]
        %v248 = vstv %s247
        %v249 = vmul.f32 %v225, %v248
        %v250 = vmul.f32 %v226, %v248
        %v251 = vadd.f32 %v245, %v249
        %v252 = vadd.f32 %v246, %v250
        %s253 = sld [smem:[#allocation6 + $0x2]]
        %v254 = vstv %s253
        %v255 = vmul.f32 %v227, %v254
        %v256 = vmul.f32 %v228, %v254
        %v257 = vadd.f32 %v251, %v255
        %v258 = vadd.f32 %v252, %v256
        %s259 = sld [smem:[#allocation6 + $0x3]]
        %v260 = vstv %s259
        %v261 = vmul.f32 %v229, %v260
        %v262 = vmul.f32 %v230, %v260
        %v263 = vadd.f32 %v257, %v261
        %v264 = vadd.f32 %v258, %v262
        %s265 = sld [smem:[#allocation6 + $0x4]]
        %v266 = vstv %s265
        %v267 = vmul.f32 %v225, %v266
        %v268 = vmul.f32 %v226, %v266
        %v269 = vadd.f32 %v263, %v267
        %v270 = vadd.f32 %v264, %v268
        %s271 = sld [smem:[#allocation6 + $0x5]]
        %v272 = vstv %s271
        %v273 = vmul.f32 %v231, %v272
        %v274 = vmul.f32 %v232, %v272
        %v275 = vadd.f32 %v269, %v273
        %v276 = vadd.f32 %v270, %v274
        %s277 = sld [smem:[#allocation6 + $0x6]]
        %v278 = vstv %s277
        %v279 = vmul.f32 %v233, %v278
        %v280 = vmul.f32 %v234, %v278
        %v281 = vadd.f32 %v275, %v279
        %v282 = vadd.f32 %v276, %v280
        %s283 = sld [smem:[#allocation6 + $0x7]]
        %v284 = vstv %s283
        %v285 = vmul.f32 %v235, %v284
        %v286 = vmul.f32 %v236, %v284
        %v287 = vadd.f32 %v281, %v285
        %v288 = vadd.f32 %v282, %v286
        %s289 = sld [smem:[#allocation6 + $0x8]]
        %v290 = vstv %s289
        %v291 = vmul.f32 %v227, %v290
        %v292 = vmul.f32 %v228, %v290
        %v293 = vadd.f32 %v287, %v291
        %v294 = vadd.f32 %v288, %v292
        %s295 = sld [smem:[#allocation6 + $0x9]]
        %v296 = vstv %s295
        %v297 = vmul.f32 %v233, %v296
        %v298 = vmul.f32 %v234, %v296
        %v299 = vadd.f32 %v293, %v297
        %v300 = vadd.f32 %v294, %v298
        %s301 = sld [smem:[#allocation6 + $0xa]]
        %v302 = vstv %s301
        %v303 = vmul.f32 %v237, %v302
        %v304 = vmul.f32 %v238, %v302
        %v305 = vadd.f32 %v299, %v303
        %v306 = vadd.f32 %v300, %v304
        %s307 = sld [smem:[#allocation6 + $0xb]]
        %v308 = vstv %s307
        %v309 = vmul.f32 %v239, %v308
        %v310 = vmul.f32 %v240, %v308
        %v311 = vadd.f32 %v305, %v309
        %v312 = vadd.f32 %v306, %v310
        %s313 = sld [smem:[#allocation6 + $0xc]]
        %v314 = vstv %s313
        %v315 = vmul.f32 %v229, %v314
        %v316 = vmul.f32 %v230, %v314
        %v317 = vadd.f32 %v311, %v315
        %v318 = vadd.f32 %v312, %v316
        %s319 = sld [smem:[#allocation6 + $0xd]]
        %v320 = vstv %s319
        %v321 = vmul.f32 %v235, %v320
        %v322 = vmul.f32 %v236, %v320
        %v323 = vadd.f32 %v317, %v321
        %v324 = vadd.f32 %v318, %v322
        %s325 = sld [smem:[#allocation6 + $0xe]]
        %v326 = vstv %s325
        %v327 = vmul.f32 %v239, %v326
        %v328 = vmul.f32 %v240, %v326
        %v329 = vadd.f32 %v323, %v327
        %v330 = vadd.f32 %v324, %v328
        %s331 = sld [smem:[#allocation6 + $0xf]]
        %v332 = vstv %s331
        %v333 = vmul.f32 %v241, %v332
        %v334 = vmul.f32 %v242, %v332
        %v335 = vadd.f32 %v329, %v333
        %v336 = vadd.f32 %v330, %v334
        %s337 = sld [smem:[#allocation7]]
        %v338 = vstv %s337
        %v339 = vadd.f32 %v335, %v338
        %v340 = vadd.f32 %v336, %v338
        %v341 = vmax.f32 %v339, 0.0
        %v342 = vmax.f32 %v340, 0.0
        %v343 = vadd.f32 %v341, %v342
        %v344 = vrot.slane %v343, 4
        %v345 = vadd.f32 %v343, %v344
        %v346 = vrot.slane %v345, 2
        %v347 = vadd.f32 %v345, %v346
        %v348 = vrot.slane %v347, 1
        %v349 = vadd.f32 %v347, %v348
        %s350 = sld [smem:[#allocation6 + $0x10]]
        %v351 = vstv %s350
        %v352 = vmul.f32 %v223, %v351
        %v353 = vmul.f32 %v224, %v351
        %s354 = sld [smem:[#allocation6 + $0x11]]
        %v355 = vstv %s354
        %v356 = vmul.f32 %v225, %v355
        %v357 = vmul.f32 %v226, %v355
        %v358 = vadd.f32 %v352, %v356
        %v359 = vadd.f32 %v353, %v357
        %s360 = sld [smem:[#allocation6 + $0x12]]
        %v361 = vstv %s360
        %v362 = vmul.f32 %v227, %v361
        %v363 = vmul.f32 %v228, %v361
        %v364 = vadd.f32 %v358, %v362
        %v365 = vadd.f32 %v359, %v363
        %s366 = sld [smem:[#allocation6 + $0x13]]
        %v367 = vstv %s366
        %v368 = vmul.f32 %v229, %v367
        %v369 = vmul.f32 %v230, %v367
        %v370 = vadd.f32 %v364, %v368
        %v371 = vadd.f32 %v365, %v369
        %s372 = sld [smem:[#allocation6 + $0x14]]
        %v373 = vstv %s372
        %v374 = vmul.f32 %v225, %v373
        %v375 = vmul.f32 %v226, %v373
        %v376 = vadd.f32 %v370, %v374
        %v377 = vadd.f32 %v371, %v375
        %s378 = sld [smem:[#allocation6 + $0x15]]
        %v379 = vstv %s378
        %v380 = vmul.f32 %v231, %v379
        %v381 = vmul.f32 %v232, %v379
        %v382 = vadd.f32 %v376, %v380
        %v383 = vadd.f32 %v377, %v381
        %s384 = sld [smem:[#allocation6 + $0x16]]
        %v385 = vstv %s384
        %v386 = vmul.f32 %v233, %v385
        %v387 = vmul.f32 %v234, %v385
        %v388 = vadd.f32 %v382, %v386
        %v389 = vadd.f32 %v383, %v387
        %s390 = sld [smem:[#allocation6 + $0x17]]
        %v391 = vstv %s390
        %v392 = vmul.f32 %v235, %v391
        %v393 = vmul.f32 %v236, %v391
        %v394 = vadd.f32 %v388, %v392
        %v395 = vadd.f32 %v389, %v393
        %s396 = sld [smem:[#allocation6 + $0x18]]
        %v397 = vstv %s396
        %v398 = vmul.f32 %v227, %v397
        %v399 = vmul.f32 %v228, %v397
        %v400 = vadd.f32 %v394, %v398
        %v401 = vadd.f32 %v395, %v399
        %s402 = sld [smem:[#allocation6 + $0x19]]
        %v403 = vstv %s402
        %v404 = vmul.f32 %v233, %v403
        %v405 = vmul.f32 %v234, %v403
        %v406 = vadd.f32 %v400, %v404
        %v407 = vadd.f32 %v401, %v405
        %s408 = sld [smem:[#allocation6 + $0x1a]]
        %v409 = vstv %s408
        %v410 = vmul.f32 %v237, %v409
        %v411 = vmul.f32 %v238, %v409
        %v412 = vadd.f32 %v406, %v410
        %v413 = vadd.f32 %v407, %v411
        %s414 = sld [smem:[#allocation6 + $0x1b]]
        %v415 = vstv %s414
        %v416 = vmul.f32 %v239, %v415
        %v417 = vmul.f32 %v240, %v415
        %v418 = vadd.f32 %v412, %v416
        %v419 = vadd.f32 %v413, %v417
        %s420 = sld [smem:[#allocation6 + $0x1c]]
        %v421 = vstv %s420
        %v422 = vmul.f32 %v229, %v421
        %v423 = vmul.f32 %v230, %v421
        %v424 = vadd.f32 %v418, %v422
        %v425 = vadd.f32 %v419, %v423
        %s426 = sld [smem:[#allocation6 + $0x1d]]
        %v427 = vstv %s426
        %v428 = vmul.f32 %v235, %v427
        %v429 = vmul.f32 %v236, %v427
        %v430 = vadd.f32 %v424, %v428
        %v431 = vadd.f32 %v425, %v429
        %s432 = sld [smem:[#allocation6 + $0x1e]]
        %v433 = vstv %s432
        %v434 = vmul.f32 %v239, %v433
        %v435 = vmul.f32 %v240, %v433
        %v436 = vadd.f32 %v430, %v434
        %v437 = vadd.f32 %v431, %v435
        %s438 = sld [smem:[#allocation6 + $0x1f]]
        %v439 = vstv %s438
        %v440 = vmul.f32 %v241, %v439
        %v441 = vmul.f32 %v242, %v439
        %v442 = vadd.f32 %v436, %v440
        %v443 = vadd.f32 %v437, %v441
        %s444 = sld [smem:[#allocation7 + $0x1]]
        %v445 = vstv %s444
        %v446 = vadd.f32 %v442, %v445
        %v447 = vadd.f32 %v443, %v445
        %v448 = vmax.f32 %v446, 0.0
        %v449 = vmax.f32 %v447, 0.0
        %v450 = vadd.f32 %v448, %v449
        %v451 = vrot.slane %v450, 4
        %v452 = vadd.f32 %v450, %v451
        %v453 = vrot.slane %v452, 2
        %v454 = vadd.f32 %v452, %v453
        %v455 = vrot.slane %v454, 1
        %v456 = vadd.f32 %v454, %v455
        %s457 = sld [smem:[#allocation6 + $0x20]]
        %v458 = vstv %s457
        %v459 = vmul.f32 %v223, %v458
        %v460 = vmul.f32 %v224, %v458
        %s461 = sld [smem:[#allocation6 + $0x21]]
        %v462 = vstv %s461
        %v463 = vmul.f32 %v225, %v462
        %v464 = vmul.f32 %v226, %v462
        %v465 = vadd.f32 %v459, %v463
        %v466 = vadd.f32 %v460, %v464
        %s467 = sld [smem:[#allocation6 + $0x22]]
        %v468 = vstv %s467
        %v469 = vmul.f32 %v227, %v468
        %v470 = vmul.f32 %v228, %v468
        %v471 = vadd.f32 %v465, %v469
        %v472 = vadd.f32 %v466, %v470
        %s473 = sld [smem:[#allocation6 + $0x23]]
        %v474 = vstv %s473
        %v475 = vmul.f32 %v229, %v474
        %v476 = vmul.f32 %v230, %v474
        %v477 = vadd.f32 %v471, %v475
        %v478 = vadd.f32 %v472, %v476
        %s479 = sld [smem:[#allocation6 + $0x24]]
        %v480 = vstv %s479
        %v481 = vmul.f32 %v225, %v480
        %v482 = vmul.f32 %v226, %v480
        %v483 = vadd.f32 %v477, %v481
        %v484 = vadd.f32 %v478, %v482
        %s485 = sld [smem:[#allocation6 + $0x25]]
        %v486 = vstv %s485
        %v487 = vmul.f32 %v231, %v486
        %v488 = vmul.f32 %v232, %v486
        %v489 = vadd.f32 %v483, %v487
        %v490 = vadd.f32 %v484, %v488
        %s491 = sld [smem:[#allocation6 + $0x26]]
        %v492 = vstv %s491
        %v493 = vmul.f32 %v233, %v492
        %v494 = vmul.f32 %v234, %v492
        %v495 = vadd.f32 %v489, %v493
        %v496 = vadd.f32 %v490, %v494
        %s497 = sld [smem:[#allocation6 + $0x27]]
        %v498 = vstv %s497
        %v499 = vmul.f32 %v235, %v498
        %v500 = vmul.f32 %v236, %v498
        %v501 = vadd.f32 %v495, %v499
        %v502 = vadd.f32 %v496, %v500
        %s503 = sld [smem:[#allocation6 + $0x28]]
        %v504 = vstv %s503
        %v505 = vmul.f32 %v227, %v504
        %v506 = vmul.f32 %v228, %v504
        %v507 = vadd.f32 %v501, %v505
        %v508 = vadd.f32 %v502, %v506
        %s509 = sld [smem:[#allocation6 + $0x29]]
        %v510 = vstv %s509
        %v511 = vmul.f32 %v233, %v510
        %v512 = vmul.f32 %v234, %v510
        %v513 = vadd.f32 %v507, %v511
        %v514 = vadd.f32 %v508, %v512
        %s515 = sld [smem:[#allocation6 + $0x2a]]
        %v516 = vstv %s515
        %v517 = vmul.f32 %v237, %v516
        %v518 = vmul.f32 %v238, %v516
        %v519 = vadd.f32 %v513, %v517
        %v520 = vadd.f32 %v514, %v518
        %s521 = sld [smem:[#allocation6 + $0x2b]]
        %v522 = vstv %s521
        %v523 = vmul.f32 %v239, %v522
        %v524 = vmul.f32 %v240, %v522
        %v525 = vadd.f32 %v519, %v523
        %v526 = vadd.f32 %v520, %v524
        %s527 = sld [smem:[#allocation6 + $0x2c]]
        %v528 = vstv %s527
        %v529 = vmul.f32 %v229, %v528
        %v530 = vmul.f32 %v230, %v528
        %v531 = vadd.f32 %v525, %v529
        %v532 = vadd.f32 %v526, %v530
        %s533 = sld [smem:[#allocation6 + $0x2d]]
        %v534 = vstv %s533
        %v535 = vmul.f32 %v235, %v534
        %v536 = vmul.f32 %v236, %v534
        %v537 = vadd.f32 %v531, %v535
        %v538 = vadd.f32 %v532, %v536
        %s539 = sld [smem:[#allocation6 + $0x2e]]
        %v540 = vstv %s539
        %v541 = vmul.f32 %v239, %v540
        %v542 = vmul.f32 %v240, %v540
        %v543 = vadd.f32 %v537, %v541
        %v544 = vadd.f32 %v538, %v542
        %s545 = sld [smem:[#allocation6 + $0x2f]]
        %v546 = vstv %s545
        %v547 = vmul.f32 %v241, %v546
        %v548 = vmul.f32 %v242, %v546
        %v549 = vadd.f32 %v543, %v547
        %v550 = vadd.f32 %v544, %v548
        %s551 = sld [smem:[#allocation7 + $0x2]]
        %v552 = vstv %s551
        %v553 = vadd.f32 %v549, %v552
        %v554 = vadd.f32 %v550, %v552
        %v555 = vmax.f32 %v553, 0.0
        %v556 = vmax.f32 %v554, 0.0
        %v557 = vadd.f32 %v555, %v556
        %v558 = vrot.slane %v557, 4
        %v559 = vadd.f32 %v557, %v558
        %v560 = vrot.slane %v559, 2
        %v561 = vadd.f32 %v559, %v560
        %v562 = vrot.slane %v561, 1
        %v563 = vadd.f32 %v561, %v562
        %s564 = sld [smem:[#allocation6 + $0x30]]
        %v565 = vstv %s564
        %v566 = vmul.f32 %v223, %v565
        %v567 = vmul.f32 %v224, %v565
        %s568 = sld [smem:[#allocation6 + $0x31]]
        %v569 = vstv %s568
        %v570 = vmul.f32 %v225, %v569
        %v571 = vmul.f32 %v226, %v569
        %v572 = vadd.f32 %v566, %v570
        %v573 = vadd.f32 %v567, %v571
        %s574 = sld [smem:[#allocation6 + $0x32]]
        %v575 = vstv %s574
        %v576 = vmul.f32 %v227, %v575
        %v577 = vmul.f32 %v228, %v575
        %v578 = vadd.f32 %v572, %v576
        %v579 = vadd.f32 %v573, %v577
        %s580 = sld [smem:[#allocation6 + $0x33]]
        %v581 = vstv %s580
        %v582 = vmul.f32 %v229, %v581
        %v583 = vmul.f32 %v230, %v581
        %v584 = vadd.f32 %v578, %v582
        %v585 = vadd.f32 %v579, %v583
        %s586 = sld [smem:[#allocation6 + $0x34]]
        %v587 = vstv %s586
        %v588 = vmul.f32 %v225, %v587
        %v589 = vmul.f32 %v226, %v587
        %v590 = vadd.f32 %v584, %v588
        %v591 = vadd.f32 %v585, %v589
        %s592 = sld [smem:[#allocation6 + $0x35]]
        %v593 = vstv %s592
        %v594 = vmul.f32 %v231, %v593
        %v595 = vmul.f32 %v232, %v593
        %v596 = vadd.f32 %v590, %v594
        %v597 = vadd.f32 %v591, %v595
        %s598 = sld [smem:[#allocation6 + $0x36]]
        %v599 = vstv %s598
        %v600 = vmul.f32 %v233, %v599
        %v601 = vmul.f32 %v234, %v599
        %v602 = vadd.f32 %v596, %v600
        %v603 = vadd.f32 %v597, %v601
        %s604 = sld [smem:[#allocation6 + $0x37]]
        %v605 = vstv %s604
        %v606 = vmul.f32 %v235, %v605
        %v607 = vmul.f32 %v236, %v605
        %v608 = vadd.f32 %v602, %v606
        %v609 = vadd.f32 %v603, %v607
        %s610 = sld [smem:[#allocation6 + $0x38]]
        %v611 = vstv %s610
        %v612 = vmul.f32 %v227, %v611
        %v613 = vmul.f32 %v228, %v611
        %v614 = vadd.f32 %v608, %v612
        %v615 = vadd.f32 %v609, %v613
        %s616 = sld [smem:[#allocation6 + $0x39]]
        %v617 = vstv %s616
        %v618 = vmul.f32 %v233, %v617
        %v619 = vmul.f32 %v234, %v617
        %v620 = vadd.f32 %v614, %v618
        %v621 = vadd.f32 %v615, %v619
        %s622 = sld [smem:[#allocation6 + $0x3a]]
        %v623 = vstv %s622
        %v624 = vmul.f32 %v237, %v623
        %v625 = vmul.f32 %v238, %v623
        %v626 = vadd.f32 %v620, %v624
        %v627 = vadd.f32 %v621, %v625
        %s628 = sld [smem:[#allocation6 + $0x3b]]
        %v629 = vstv %s628
        %v630 = vmul.f32 %v239, %v629
        %v631 = vmul.f32 %v240, %v629
        %v632 = vadd.f32 %v626, %v630
        %v633 = vadd.f32 %v627, %v631
        %s634 = sld [smem:[#allocation6 + $0x3c]]
        %v635 = vstv %s634
        %v636 = vmul.f32 %v229, %v635
        %v637 = vmul.f32 %v230, %v635
        %v638 = vadd.f32 %v632, %v636
        %v639 = vadd.f32 %v633, %v637
        %s640 = sld [smem:[#allocation6 + $0x3d]]
        %v641 = vstv %s640
        %v642 = vmul.f32 %v235, %v641
        %v643 = vmul.f32 %v236, %v641
        %v644 = vadd.f32 %v638, %v642
        %v645 = vadd.f32 %v639, %v643
        %s646 = sld [smem:[#allocation6 + $0x3e]]
        %v647 = vstv %s646
        %v648 = vmul.f32 %v239, %v647
        %v649 = vmul.f32 %v240, %v647
        %v650 = vadd.f32 %v644, %v648
        %v651 = vadd.f32 %v645, %v649
        %s652 = sld [smem:[#allocation6 + $0x3f]]
        %v653 = vstv %s652
        %v654 = vmul.f32 %v241, %v653
        %v655 = vmul.f32 %v242, %v653
        %v656 = vadd.f32 %v650, %v654
        %v657 = vadd.f32 %v651, %v655
        %s658 = sld [smem:[#allocation7 + $0x3]]
        %v659 = vstv %s658
        %v660 = vadd.f32 %v656, %v659
        %v661 = vadd.f32 %v657, %v659
        %v662 = vmax.f32 %v660, 0.0
        %v663 = vmax.f32 %v661, 0.0
        %v664 = vadd.f32 %v662, %v663
        %v665 = vrot.slane %v664, 4
        %v666 = vadd.f32 %v664, %v665
        %v667 = vrot.slane %v666, 2
        %v668 = vadd.f32 %v666, %v667
        %v669 = vrot.slane %v668, 1
        %v670 = vadd.f32 %v668, %v669
        %v671 = vmul.f32 %v215, %v341
        %v672 = vmul.f32 %v216, %v342
        %v673 = vmul.f32 %v215, %v448
        %v674 = vmul.f32 %v216, %v449
        %v675 = vmul.f32 %v215, %v555
        %v676 = vmul.f32 %v216, %v556
        %v677 = vmul.f32 %v215, %v662
        %v678 = vmul.f32 %v216, %v663
        %v679 = vmul.f32 %v217, %v341
        %v680 = vmul.f32 %v218, %v342
        %v681 = vmul.f32 %v217, %v448
        %v682 = vmul.f32 %v218, %v449
        %v683 = vmul.f32 %v217, %v555
        %v684 = vmul.f32 %v218, %v556
        %v685 = vmul.f32 %v217, %v662
        %v686 = vmul.f32 %v218, %v663
        %v687 = vmul.f32 %v219, %v341
        %v688 = vmul.f32 %v220, %v342
        %v689 = vmul.f32 %v219, %v448
        %v690 = vmul.f32 %v220, %v449
        %v691 = vmul.f32 %v219, %v555
        %v692 = vmul.f32 %v220, %v556
        %v693 = vmul.f32 %v219, %v662
        %v694 = vmul.f32 %v220, %v663
        %v695 = vmul.f32 %v221, %v341
        %v696 = vmul.f32 %v222, %v342
        %v697 = vmul.f32 %v221, %v448
        %v698 = vmul.f32 %v222, %v449
        %v699 = vmul.f32 %v221, %v555
        %v700 = vmul.f32 %v222, %v556
        %v701 = vmul.f32 %v221, %v662
        %v702 = vmul.f32 %v222, %v663
        %s703 = sld [smem:[#allocation6 + $0x40]]
        %v704 = vstv %s703
        %v705 = vmul.f32 %v671, %v704
        %v706 = vmul.f32 %v672, %v704
        %s707 = sld [smem:[#allocation6 + $0x41]]
        %v708 = vstv %s707
        %v709 = vmul.f32 %v673, %v708
        %v710 = vmul.f32 %v674, %v708
        %v711 = vadd.f32 %v705, %v709
        %v712 = vadd.f32 %v706, %v710
        %s713 = sld [smem:[#allocation6 + $0x42]]
        %v714 = vstv %s713
        %v715 = vmul.f32 %v675, %v714
        %v716 = vmul.f32 %v676, %v714
        %v717 = vadd.f32 %v711, %v715
        %v718 = vadd.f32 %v712, %v716
        %s719 = sld [smem:[#allocation6 + $0x43]]
        %v720 = vstv %s719
        %v721 = vmul.f32 %v677, %v720
        %v722 = vmul.f32 %v678, %v720
        %v723 = vadd.f32 %v717, %v721
        %v724 = vadd.f32 %v718, %v722
        %s725 = sld [smem:[#allocation6 + $0x44]]
        %v726 = vstv %s725
        %v727 = vmul.f32 %v679, %v726
        %v728 = vmul.f32 %v680, %v726
        %v729 = vadd.f32 %v723, %v727
        %v730 = vadd.f32 %v724, %v728
        %s731 = sld [smem:[#allocation6 + $0x45]]
        %v732 = vstv %s731
        %v733 = vmul.f32 %v681, %v732
        %v734 = vmul.f32 %v682, %v732
        %v735 = vadd.f32 %v729, %v733
        %v736 = vadd.f32 %v730, %v734
        %s737 = sld [smem:[#allocation6 + $0x46]]
        %v738 = vstv %s737
        %v739 = vmul.f32 %v683, %v738
        %v740 = vmul.f32 %v684, %v738
        %v741 = vadd.f32 %v735, %v739
        %v742 = vadd.f32 %v736, %v740
        %s743 = sld [smem:[#allocation6 + $0x47]]
        %v744 = vstv %s743
        %v745 = vmul.f32 %v685, %v744
        %v746 = vmul.f32 %v686, %v744
        %v747 = vadd.f32 %v741, %v745
        %v748 = vadd.f32 %v742, %v746
        %s749 = sld [smem:[#allocation6 + $0x48]]
        %v750 = vstv %s749
        %v751 = vmul.f32 %v687, %v750
        %v752 = vmul.f32 %v688, %v750
        %v753 = vadd.f32 %v747, %v751
        %v754 = vadd.f32 %v748, %v752
        %s755 = sld [smem:[#allocation6 + $0x49]]
        %v756 = vstv %s755
        %v757 = vmul.f32 %v689, %v756
        %v758 = vmul.f32 %v690, %v756
        %v759 = vadd.f32 %v753, %v757
        %v760 = vadd.f32 %v754, %v758
        %s761 = sld [smem:[#allocation6 + $0x4a]]
        %v762 = vstv %s761
        %v763 = vmul.f32 %v691, %v762
        %v764 = vmul.f32 %v692, %v762
        %v765 = vadd.f32 %v759, %v763
        %v766 = vadd.f32 %v760, %v764
        %s767 = sld [smem:[#allocation6 + $0x4b]]
        %v768 = vstv %s767
        %v769 = vmul.f32 %v693, %v768
        %v770 = vmul.f32 %v694, %v768
        %v771 = vadd.f32 %v765, %v769
        %v772 = vadd.f32 %v766, %v770
        %s773 = sld [smem:[#allocation6 + $0x4c]]
        %v774 = vstv %s773
        %v775 = vmul.f32 %v695, %v774
        %v776 = vmul.f32 %v696, %v774
        %v777 = vadd.f32 %v771, %v775
        %v778 = vadd.f32 %v772, %v776
        %s779 = sld [smem:[#allocation6 + $0x4d]]
        %v780 = vstv %s779
        %v781 = vmul.f32 %v697, %v780
        %v782 = vmul.f32 %v698, %v780
        %v783 = vadd.f32 %v777, %v781
        %v784 = vadd.f32 %v778, %v782
        %s785 = sld [smem:[#allocation6 + $0x4e]]
        %v786 = vstv %s785
        %v787 = vmul.f32 %v699, %v786
        %v788 = vmul.f32 %v700, %v786
        %v789 = vadd.f32 %v783, %v787
        %v790 = vadd.f32 %v784, %v788
        %s791 = sld [smem:[#allocation6 + $0x4f]]
        %v792 = vstv %s791
        %v793 = vmul.f32 %v701, %v792
        %v794 = vmul.f32 %v702, %v792
        %v795 = vadd.f32 %v789, %v793
        %v796 = vadd.f32 %v790, %v794
        %s797 = sld [smem:[#allocation7 + $0x4]]
        %v798 = vstv %s797
        %v799 = vadd.f32 %v795, %v798
        %v800 = vadd.f32 %v796, %v798
        %v801 = vmax.f32 %v799, 0.0
        %v802 = vmax.f32 %v800, 0.0
        %v803 = vadd.f32 %v801, %v802
        %v804 = vrot.slane %v803, 4
        %v805 = vadd.f32 %v803, %v804
        %v806 = vrot.slane %v805, 2
        %v807 = vadd.f32 %v805, %v806
        %v808 = vrot.slane %v807, 1
        %v809 = vadd.f32 %v807, %v808
        %s810 = sld [smem:[#allocation6 + $0x50]]
        %v811 = vstv %s810
        %v812 = vmul.f32 %v671, %v811
        %v813 = vmul.f32 %v672, %v811
        %s814 = sld [smem:[#allocation6 + $0x51]]
        %v815 = vstv %s814
        %v816 = vmul.f32 %v673, %v815
        %v817 = vmul.f32 %v674, %v815
        %v818 = vadd.f32 %v812, %v816
        %v819 = vadd.f32 %v813, %v817
        %s820 = sld [smem:[#allocation6 + $0x52]]
        %v821 = vstv %s820
        %v822 = vmul.f32 %v675, %v821
        %v823 = vmul.f32 %v676, %v821
        %v824 = vadd.f32 %v818, %v822
        %v825 = vadd.f32 %v819, %v823
        %s826 = sld [smem:[#allocation6 + $0x53]]
        %v827 = vstv %s826
        %v828 = vmul.f32 %v677, %v827
        %v829 = vmul.f32 %v678, %v827
        %v830 = vadd.f32 %v824, %v828
        %v831 = vadd.f32 %v825, %v829
        %s832 = sld [smem:[#allocation6 + $0x54]]
        %v833 = vstv %s832
        %v834 = vmul.f32 %v679, %v833
        %v835 = vmul.f32 %v680, %v833
        %v836 = vadd.f32 %v830, %v834
        %v837 = vadd.f32 %v831, %v835
        %s838 = sld [smem:[#allocation6 + $0x55]]
        %v839 = vstv %s838
        %v840 = vmul.f32 %v681, %v839
        %v841 = vmul.f32 %v682, %v839
        %v842 = vadd.f32 %v836, %v840
        %v843 = vadd.f32 %v837, %v841
        %s844 = sld [smem:[#allocation6 + $0x56]]
        %v845 = vstv %s844
        %v846 = vmul.f32 %v683, %v845
        %v847 = vmul.f32 %v684, %v845
        %v848 = vadd.f32 %v842, %v846
        %v849 = vadd.f32 %v843, %v847
        %s850 = sld [smem:[#allocation6 + $0x57]]
        %v851 = vstv %s850
        %v852 = vmul.f32 %v685, %v851
        %v853 = vmul.f32 %v686, %v851
        %v854 = vadd.f32 %v848, %v852
        %v855 = vadd.f32 %v849, %v853
        %s856 = sld [smem:[#allocation6 + $0x58]]
        %v857 = vstv %s856
        %v858 = vmul.f32 %v687, %v857
        %v859 = vmul.f32 %v688, %v857
        %v860 = vadd.f32 %v854, %v858
        %v861 = vadd.f32 %v855, %v859
        %s862 = sld [smem:[#allocation6 + $0x59]]
        %v863 = vstv %s862
        %v864 = vmul.f32 %v689, %v863
        %v865 = vmul.f32 %v690, %v863
        %v866 = vadd.f32 %v860, %v864
        %v867 = vadd.f32 %v861, %v865
        %s868 = sld [smem:[#allocation6 + $0x5a]]
        %v869 = vstv %s868
        %v870 = vmul.f32 %v691, %v869
        %v871 = vmul.f32 %v692, %v869
        %v872 = vadd.f32 %v866, %v870
        %v873 = vadd.f32 %v867, %v871
        %s874 = sld [smem:[#allocation6 + $0x5b]]
        %v875 = vstv %s874
        %v876 = vmul.f32 %v693, %v875
        %v877 = vmul.f32 %v694, %v875
        %v878 = vadd.f32 %v872, %v876
        %v879 = vadd.f32 %v873, %v877
        %s880 = sld [smem:[#allocation6 + $0x5c]]
        %v881 = vstv %s880
        %v882 = vmul.f32 %v695, %v881
        %v883 = vmul.f32 %v696, %v881
        %v884 = vadd.f32 %v878, %v882
        %v885 = vadd.f32 %v879, %v883
        %s886 = sld [smem:[#allocation6 + $0x5d]]
        %v887 = vstv %s886
        %v888 = vmul.f32 %v697, %v887
        %v889 = vmul.f32 %v698, %v887
        %v890 = vadd.f32 %v884, %v888
        %v891 = vadd.f32 %v885, %v889
        %s892 = sld [smem:[#allocation6 + $0x5e]]
        %v893 = vstv %s892
        %v894 = vmul.f32 %v699, %v893
        %v895 = vmul.f32 %v700, %v893
        %v896 = vadd.f32 %v890, %v894
        %v897 = vadd.f32 %v891, %v895
        %s898 = sld [smem:[#allocation6 + $0x5f]]
        %v899 = vstv %s898
        %v900 = vmul.f32 %v701, %v899
        %v901 = vmul.f32 %v702, %v899
        %v902 = vadd.f32 %v896, %v900
        %v903 = vadd.f32 %v897, %v901
        %s904 = sld [smem:[#allocation7 + $0x5]]
        %v905 = vstv %s904
        %v906 = vadd.f32 %v902, %v905
        %v907 = vadd.f32 %v903, %v905
        %v908 = vmax.f32 %v906, 0.0
        %v909 = vmax.f32 %v907, 0.0
        %v910 = vadd.f32 %v908, %v909
        %v911 = vrot.slane %v910, 4
        %v912 = vadd.f32 %v910, %v911
        %v913 = vrot.slane %v912, 2
        %v914 = vadd.f32 %v912, %v913
        %v915 = vrot.slane %v914, 1
        %v916 = vadd.f32 %v914, %v915
        %s917 = sld [smem:[#allocation6 + $0x60]]
        %v918 = vstv %s917
        %v919 = vmul.f32 %v671, %v918
        %v920 = vmul.f32 %v672, %v918
        %s921 = sld [smem:[#allocation6 + $0x61]]
        %v922 = vstv %s921
        %v923 = vmul.f32 %v673, %v922
        %v924 = vmul.f32 %v674, %v922
        %v925 = vadd.f32 %v919, %v923
        %v926 = vadd.f32 %v920, %v924
        %s927 = sld [smem:[#allocation6 + $0x62]]
        %v928 = vstv %s927
        %v929 = vmul.f32 %v675, %v928
        %v930 = vmul.f32 %v676, %v928
        %v931 = vadd.f32 %v925, %v929
        %v932 = vadd.f32 %v926, %v930
        %s933 = sld [smem:[#allocation6 + $0x63]]
        %v934 = vstv %s933
        %v935 = vmul.f32 %v677, %v934
        %v936 = vmul.f32 %v678, %v934
        %v937 = vadd.f32 %v931, %v935
        %v938 = vadd.f32 %v932, %v936
        %s939 = sld [smem:[#allocation6 + $0x64]]
        %v940 = vstv %s939
        %v941 = vmul.f32 %v679, %v940
        %v942 = vmul.f32 %v680, %v940
        %v943 = vadd.f32 %v937, %v941
        %v944 = vadd.f32 %v938, %v942
        %s945 = sld [smem:[#allocation6 + $0x65]]
        %v946 = vstv %s945
        %v947 = vmul.f32 %v681, %v946
        %v948 = vmul.f32 %v682, %v946
        %v949 = vadd.f32 %v943, %v947
        %v950 = vadd.f32 %v944, %v948
        %s951 = sld [smem:[#allocation6 + $0x66]]
        %v952 = vstv %s951
        %v953 = vmul.f32 %v683, %v952
        %v954 = vmul.f32 %v684, %v952
        %v955 = vadd.f32 %v949, %v953
        %v956 = vadd.f32 %v950, %v954
        %s957 = sld [smem:[#allocation6 + $0x67]]
        %v958 = vstv %s957
        %v959 = vmul.f32 %v685, %v958
        %v960 = vmul.f32 %v686, %v958
        %v961 = vadd.f32 %v955, %v959
        %v962 = vadd.f32 %v956, %v960
        %s963 = sld [smem:[#allocation6 + $0x68]]
        %v964 = vstv %s963
        %v965 = vmul.f32 %v687, %v964
        %v966 = vmul.f32 %v688, %v964
        %v967 = vadd.f32 %v961, %v965
        %v968 = vadd.f32 %v962, %v966
        %s969 = sld [smem:[#allocation6 + $0x69]]
        %v970 = vstv %s969
        %v971 = vmul.f32 %v689, %v970
        %v972 = vmul.f32 %v690, %v970
        %v973 = vadd.f32 %v967, %v971
        %v974 = vadd.f32 %v968, %v972
        %s975 = sld [smem:[#allocation6 + $0x6a]]
        %v976 = vstv %s975
        %v977 = vmul.f32 %v691, %v976
        %v978 = vmul.f32 %v692, %v976
        %v979 = vadd.f32 %v973, %v977
        %v980 = vadd.f32 %v974, %v978
        %s981 = sld [smem:[#allocation6 + $0x6b]]
        %v982 = vstv %s981
        %v983 = vmul.f32 %v693, %v982
        %v984 = vmul.f32 %v694, %v982
        %v985 = vadd.f32 %v979, %v983
        %v986 = vadd.f32 %v980, %v984
        %s987 = sld [smem:[#allocation6 + $0x6c]]
        %v988 = vstv %s987
        %v989 = vmul.f32 %v695, %v988
        %v990 = vmul.f32 %v696, %v988
        %v991 = vadd.f32 %v985, %v989
        %v992 = vadd.f32 %v986, %v990
        %s993 = sld [smem:[#allocation6 + $0x6d]]
        %v994 = vstv %s993
        %v995 = vmul.f32 %v697, %v994
        %v996 = vmul.f32 %v698, %v994
        %v997 = vadd.f32 %v991, %v995
        %v998 = vadd.f32 %v992, %v996
        %s999 = sld [smem:[#allocation6 + $0x6e]]
        %v1000 = vstv %s999
        %v1001 = vmul.f32 %v699, %v1000
        %v1002 = vmul.f32 %v700, %v1000
        %v1003 = vadd.f32 %v997, %v1001
        %v1004 = vadd.f32 %v998, %v1002
        %s1005 = sld [smem:[#allocation6 + $0x6f]]
        %v1006 = vstv %s1005
        %v1007 = vmul.f32 %v701, %v1006
        %v1008 = vmul.f32 %v702, %v1006
        %v1009 = vadd.f32 %v1003, %v1007
        %v1010 = vadd.f32 %v1004, %v1008
        %s1011 = sld [smem:[#allocation7 + $0x6]]
        %v1012 = vstv %s1011
        %v1013 = vadd.f32 %v1009, %v1012
        %v1014 = vadd.f32 %v1010, %v1012
        %v1015 = vmax.f32 %v1013, 0.0
        %v1016 = vmax.f32 %v1014, 0.0
        %v1017 = vadd.f32 %v1015, %v1016
        %v1018 = vrot.slane %v1017, 4
        %v1019 = vadd.f32 %v1017, %v1018
        %v1020 = vrot.slane %v1019, 2
        %v1021 = vadd.f32 %v1019, %v1020
        %v1022 = vrot.slane %v1021, 1
        %v1023 = vadd.f32 %v1021, %v1022
        %s1024 = sld [smem:[#allocation6 + $0x70]]
        %v1025 = vstv %s1024
        %v1026 = vmul.f32 %v671, %v1025
        %v1027 = vmul.f32 %v672, %v1025
        %s1028 = sld [smem:[#allocation6 + $0x71]]
        %v1029 = vstv %s1028
        %v1030 = vmul.f32 %v673, %v1029
        %v1031 = vmul.f32 %v674, %v1029
        %v1032 = vadd.f32 %v1026, %v1030
        %v1033 = vadd.f32 %v1027, %v1031
        %s1034 = sld [smem:[#allocation6 + $0x72]]
        %v1035 = vstv %s1034
        %v1036 = vmul.f32 %v675, %v1035
        %v1037 = vmul.f32 %v676, %v1035
        %v1038 = vadd.f32 %v1032, %v1036
        %v1039 = vadd.f32 %v1033, %v1037
        %s1040 = sld [smem:[#allocation6 + $0x73]]
        %v1041 = vstv %s1040
        %v1042 = vmul.f32 %v677, %v1041
        %v1043 = vmul.f32 %v678, %v1041
        %v1044 = vadd.f32 %v1038, %v1042
        %v1045 = vadd.f32 %v1039, %v1043
        %s1046 = sld [smem:[#allocation6 + $0x74]]
        %v1047 = vstv %s1046
        %v1048 = vmul.f32 %v679, %v1047
        %v1049 = vmul.f32 %v680, %v1047
        %v1050 = vadd.f32 %v1044, %v1048
        %v1051 = vadd.f32 %v1045, %v1049
        %s1052 = sld [smem:[#allocation6 + $0x75]]
        %v1053 = vstv %s1052
        %v1054 = vmul.f32 %v681, %v1053
        %v1055 = vmul.f32 %v682, %v1053
        %v1056 = vadd.f32 %v1050, %v1054
        %v1057 = vadd.f32 %v1051, %v1055
        %s1058 = sld [smem:[#allocation6 + $0x76]]
        %v1059 = vstv %s1058
        %v1060 = vmul.f32 %v683, %v1059
        %v1061 = vmul.f32 %v684, %v1059
        %v1062 = vadd.f32 %v1056, %v1060
        %v1063 = vadd.f32 %v1057, %v1061
        %s1064 = sld [smem:[#allocation6 + $0x77]]
        %v1065 = vstv %s1064
        %v1066 = vmul.f32 %v685, %v1065
        %v1067 = vmul.f32 %v686, %v1065
        %v1068 = vadd.f32 %v1062, %v1066
        %v1069 = vadd.f32 %v1063, %v1067
        %s1070 = sld [smem:[#allocation6 + $0x78]]
        %v1071 = vstv %s1070
        %v1072 = vmul.f32 %v687, %v1071
        %v1073 = vmul.f32 %v688, %v1071
        %v1074 = vadd.f32 %v1068, %v1072
        %v1075 = vadd.f32 %v1069, %v1073
        %s1076 = sld [smem:[#allocation6 + $0x79]]
        %v1077 = vstv %s1076
        %v1078 = vmul.f32 %v689, %v1077
        %v1079 = vmul.f32 %v690, %v1077
        %v1080 = vadd.f32 %v1074, %v1078
        %v1081 = vadd.f32 %v1075, %v1079
        %s1082 = sld [smem:[#allocation6 + $0x7a]]
        %v1083 = vstv %s1082
        %v1084 = vmul.f32 %v691, %v1083
        %v1085 = vmul.f32 %v692, %v1083
        %v1086 = vadd.f32 %v1080, %v1084
        %v1087 = vadd.f32 %v1081, %v1085
        %s1088 = sld [smem:[#allocation6 + $0x7b]]
        %v1089 = vstv %s1088
        %v1090 = vmul.f32 %v693, %v1089
        %v1091 = vmul.f32 %v694, %v1089
        %v1092 = vadd.f32 %v1086, %v1090
        %v1093 = vadd.f32 %v1087, %v1091
        %s1094 = sld [smem:[#allocation6 + $0x7c]]
        %v1095 = vstv %s1094
        %v1096 = vmul.f32 %v695, %v1095
        %v1097 = vmul.f32 %v696, %v1095
        %v1098 = vadd.f32 %v1092, %v1096
        %v1099 = vadd.f32 %v1093, %v1097
        %s1100 = sld [smem:[#allocation6 + $0x7d]]
        %v1101 = vstv %s1100
        %v1102 = vmul.f32 %v697, %v1101
        %v1103 = vmul.f32 %v698, %v1101
        %v1104 = vadd.f32 %v1098, %v1102
        %v1105 = vadd.f32 %v1099, %v1103
        %s1106 = sld [smem:[#allocation6 + $0x7e]]
        %v1107 = vstv %s1106
        %v1108 = vmul.f32 %v699, %v1107
        %v1109 = vmul.f32 %v700, %v1107
        %v1110 = vadd.f32 %v1104, %v1108
        %v1111 = vadd.f32 %v1105, %v1109
        %s1112 = sld [smem:[#allocation6 + $0x7f]]
        %v1113 = vstv %s1112
        %v1114 = vmul.f32 %v701, %v1113
        %v1115 = vmul.f32 %v702, %v1113
        %v1116 = vadd.f32 %v1110, %v1114
        %v1117 = vadd.f32 %v1111, %v1115
        %s1118 = sld [smem:[#allocation7 + $0x7]]
        %v1119 = vstv %s1118
        %v1120 = vadd.f32 %v1116, %v1119
        %v1121 = vadd.f32 %v1117, %v1119
        %v1122 = vmax.f32 %v1120, 0.0
        %v1123 = vmax.f32 %v1121, 0.0
        %v1124 = vadd.f32 %v1122, %v1123
        %v1125 = vrot.slane %v1124, 4
        %v1126 = vadd.f32 %v1124, %v1125
        %v1127 = vrot.slane %v1126, 2
        %v1128 = vadd.f32 %v1126, %v1127
        %v1129 = vrot.slane %v1128, 1
        %v1130 = vadd.f32 %v1128, %v1129
        %vm1131 = vcmask 1040384
        %v1132 = vsel %vm1131, %v349, %v456
        %vm1133 = vcmask 1041408
        %v1134 = vsel %vm1133, %v1132, %v563
        %vm1135 = vcmask 1042432
        %v1136 = vsel %vm1135, %v1134, %v670
        %vm1137 = vcmask 1043456
        %v1138 = vsel %vm1137, %v1136, %v809
        %vm1139 = vcmask 1044480
        %v1140 = vsel %vm1139, %v1138, %v916
        %vm1141 = vcmask 1045504
        %v1142 = vsel %vm1141, %v1140, %v1023
        %vm1143 = vcmask 1046528
        %v1144 = vsel %vm1143, %v1142, %v1130
        %1145 = vst [vmem:[%s214] sm:$0xff] %v1144
        %s1146 = sand.u32 %s98, 1
        %s1147 = scalar_lea.sflag [#allocation4], %s1146
        %s1148 = sand.u32 %s98, 1
        %s1149 = smul.addr %s1148, 8
        %s1150 = scalar_lea.vmem [#allocation9], %s1149
        // Predicated region
        $region45: #{tpu_custom_call.1} parent=31 // pred_check
          %p1151 = pneg %p108
        $region46: #{tpu_custom_call.1} parent=31 // pred_check_branch
          %1153 = sbr.rel (%p1151) target = $region48
        $region47: #{tpu_custom_call.1} parent=31 // pred_region
          %s1155 = ssub.s32 128, 128
          %1156 = vsyncadd %s1147, %s1155
          %s1157 = smul.addr %s22, 128
          %s1158 = scalar_lea.hbm %s3, %s1157
          %s1160 = sshll.u32 %s1150, 4
          %s1161 = int_to_ptr.vmem [resolvable:$true] %s1160
          %1163 = dma.vmem_to_hbm [thread:$0]  %s1161, 128, %s1158, %s1147
        $region48: #{tpu_custom_call.1} parent=31 // pred_fallthru
          _
      $region32: #{tpu_custom_call.1} parent=5 // pred_fallthru
        _
      %p1164 = scmp.le.s32.totalorder 2, %s17
      // Predicated region
      $region49: #{tpu_custom_call.1} parent=5 // pred_check
        %p1165 = pneg %p1164
      $region50: #{tpu_custom_call.1} parent=5 // pred_check_branch
        %1167 = sbr.rel (%p1165) target = $region52
      $region51: #{tpu_custom_call.1} parent=5 // pred_region
        %s1168 = ssub.s32 %s17, 2
        // Predicated region
        $region53: #{tpu_custom_call.1} parent=51 // pred_check
          %p1169 = pneg %p114
        $region54: #{tpu_custom_call.1} parent=51 // pred_check_branch
          %1171 = sbr.rel (%p1169) target = $region56
        $region55: #{tpu_custom_call.1} parent=51 // pred_region
          %s1172 = sand.u32 %s99, 1
          %s1173 = scalar_lea.sflag [#allocation4], %s1172
          %s1174 = sand.u32 %s99, 1
          %s1175 = smul.addr %s1174, 8
          %s1176 = scalar_lea.vmem [#allocation9], %s1175
          %1177 = dma.done %s1173, 128
        $region56: #{tpu_custom_call.1} parent=51 // pred_fallthru
          _
      $region52: #{tpu_custom_call.1} parent=5 // pred_fallthru
        _
    $region6: #{tpu_custom_call.1} parent=1 // loop_footer
      %s21 = sadd.s32 1, %s17
    $region7: #{tpu_custom_call.1} parent=1 // loop_footer_branch
      %16 = sbr.rel target = $region3
    $region8: #{tpu_custom_call.1} parent=1 // loop_exit
      _
    %1178 = vsyncpa [#allocation3], 1
    %s1179 = scalar_lea.sflag [#allocation3], 1
    %1180 = vsyncpa %s1179, 1
    %1181 = vsyncpa [#allocation4], 1
    %s1182 = scalar_lea.sflag [#allocation4], 1
    %1183 = vsyncpa %s1182, 1
    %1184 = vsyncpa [#allocation5], 1
    %s1185 = scalar_lea.sflag [#allocation5], 1
    %1186 = vsyncpa %s1185, 1
    %1187 = vsyncpa [#allocation8], 1

</llo_original>
